<compile_context>
chip_gen: v6e
topology: v6e:2x2x1
jax: 0.10.0
libtpu: 0.0.40
codegen_flags: <defaults>
</compile_context>

<pallas_src>
import jax
import jax.numpy as jnp
from jax.experimental import pallas as pl
from jax.experimental.pallas import tpu as pltpu


def mlp_kernel(x_ref,
               w1_ref, b1_ref,
               w2_ref, b2_ref,
               w3_ref, b3_ref,
               w4_ref, b4_ref,
               o_ref):
    """One batch tile of BaseNetwork: x arrives f32, weights are bf16-resident."""
    x = x_ref[...].astype(jnp.bfloat16)                      # in-kernel cast (hidden under DMA)

    h = jnp.dot(x, w1_ref[...], preferred_element_type=jnp.float32)
    h = jnp.maximum(h.astype(jnp.bfloat16) + b1_ref[...], 0)  # bf16 bias + ReLU

    h = jnp.dot(h, w2_ref[...], preferred_element_type=jnp.float32)
    h = jnp.maximum(h.astype(jnp.bfloat16) + b2_ref[...], 0)

    h = jnp.dot(h, w3_ref[...], preferred_element_type=jnp.float32)
    h = jnp.maximum(h.astype(jnp.bfloat16) + b3_ref[...], 0)

    logits = jnp.dot(h, w4_ref[...], preferred_element_type=jnp.float32) + b4_ref[...]
    o_ref[...] = logits.astype(o_ref.dtype)                   # lane-dense (TM, 128) f32 store


def prepare_params(params):
    """One-time (init-time) conversion of f32 (in, out) params for the kernel:
       * weights -> bf16 (halves weight DMA), hidden biases -> bf16
       * final layer padded to a multiple of 128 output lanes (lane-dense store)
    Done once so the forward path has zero per-call passes over the weights."""
    (w1, b1), (w2, b2), (w3, b3), (w4, b4) = params
    act_dim = int(w4.shape[1])
    padded_act = max(128, ((act_dim + 127) // 128) * 128)
    if padded_act != act_dim:
        w4 = jnp.pad(w4, ((0, 0), (0, padded_act - act_dim)))
        b4 = jnp.pad(b4, ((0, 0), (0, padded_act - act_dim)))
    return {
        "w1": w1.astype(jnp.bfloat16), "b1": b1.astype(jnp.bfloat16),
        "w2": w2.astype(jnp.bfloat16), "b2": b2.astype(jnp.bfloat16),
        "w3": w3.astype(jnp.bfloat16), "b3": b3.astype(jnp.bfloat16),
        "w4": w4.astype(jnp.bfloat16), "b4": b4.astype(jnp.float32),
        "act_dim": act_dim, "padded_act": padded_act,
    }


def base_network_forward(s, prepared, state=None):
    """s: (batch, *state_shape) observation. prepared: output of prepare_params().
    Returns (logits, state) like BaseNetwork.forward."""
    batch = s.shape[0]
    x = s.reshape(batch, -1)                                  # == s.view(batch, -1)
    if x.dtype != jnp.float32:
        x = x.astype(jnp.float32)
    obs_dim = x.shape[1]

    act_dim, padded_act = prepared["act_dim"], prepared["padded_act"]
    operands = (prepared["w1"], prepared["b1"], prepared["w2"], prepared["b2"],
                prepared["w3"], prepared["b3"], prepared["w4"], prepared["b4"])

    # ---- batch tiling --------------------------------------------------------
    # Large batches: 512-row tiles (fewer ~0.35us grid steps, weights stay
    # resident).  Small batches: one tile rounded up to a multiple of 16 (bf16
    # sublane packing).  The pipeline masks the final partial block, so no
    # wrapper-side jnp.pad / slice over the batch axis is needed.
    if batch >= 512:
        TM = 512
    else:
        TM = ((batch + 15) // 16) * 16
    # Keep the double-buffered f32 x tile well inside the 32 MiB scoped VMEM
    # budget (only matters for very large obs_dim).
    while TM > 16 and 2 * TM * obs_dim * 4 > 12 * 1024 * 1024:
        TM //= 2
    num_tiles = pl.cdiv(batch, TM)

    def resident(arr):                                        # constant index_map -> DMA'd once
        return pl.BlockSpec(arr.shape, lambda i: (0, 0))

    in_specs = [pl.BlockSpec((TM, obs_dim), lambda i: (i, 0))]  # f32 x tile, pipelined over batch
    in_specs += [resident(a) for a in operands]
    out_specs = pl.BlockSpec((TM, padded_act), lambda i: (i, 0))

    weight_bytes = sum(a.size * a.dtype.itemsize for a in operands)
    flops = 2 * batch * sum(int(prepared[k].shape[0]) * int(prepared[k].shape[1])
                            for k in ("w1", "w2", "w3", "w4"))
    cost = pl.CostEstimate(
        flops=flops,
        transcendentals=0,
        bytes_accessed=4 * x.size + weight_bytes + 4 * batch * padded_act,
    )

    def run(dim_semantics):
        return pl.pallas_call(
            mlp_kernel,
            out_shape=jax.ShapeDtypeStruct((batch, padded_act), jnp.float32),
            grid_spec=pltpu.PrefetchScalarGridSpec(
                num_scalar_prefetch=0,
                grid=(num_tiles,),
                in_specs=in_specs,
                out_specs=out_specs,
            ),
            compiler_params=pltpu.CompilerParams(
                dimension_semantics=dim_semantics,
                vmem_limit_bytes=32 * 1024 * 1024,            # safe on v5e/v6e/v7x
            ),
            cost_estimate=cost,
        )(x, *operands)

    # v7x: shard batch tiles across both TensorCores.  Plain "parallel" is a
    # measured near no-op; CORE_PARALLEL actually changes codegen.  Fall back
    # for single-core chips / builds where that lowering is unavailable.
    core_parallel = getattr(pltpu, "CORE_PARALLEL", None)
    if num_tiles >= 2 and core_parallel is not None:
        try:
            out = run((core_parallel,))
        except Exception:  # chip/build dependent — keep the call runnable everywhere
            out = run(("arbitrary",))
    else:
        out = run(("arbitrary",))

    logits = out if padded_act == act_dim else out[:, :act_dim]
    return logits, state


def _reference_forward(s, params):
    """Pure-JAX f32 reference for correctness checking."""
    batch = s.shape[0]
    x = s.reshape(batch, -1).astype(jnp.float32)
    (w1, b1), (w2, b2), (w3, b3), (w4, b4) = params
    h = jnp.maximum(x @ w1 + b1, 0.0)
    h = jnp.maximum(h @ w2 + b2, 0.0)
    h = jnp.maximum(h @ w3 + b3, 0.0)
    return h @ w4 + b4


def init_params(key, obs_dim, act_dim):
    """Deterministic synthetic init (uniform, nn.Linear-style fan_in scaling)."""
    dims = [(obs_dim, 256), (256, 256), (256, 128), (128, act_dim)]
    params = []
    for (fan_in, fan_out) in dims:
        key, kw, kb = jax.random.split(key, 3)
        bound = 1.0 / jnp.sqrt(jnp.float32(fan_in))
        w = jax.random.uniform(kw, (fan_in, fan_out), jnp.float32, -bound, bound)
        b = jax.random.uniform(kb, (1, fan_out), jnp.float32, -bound, bound)
        params.append((w, b))
    return params


if __name__ == "__main__":
    key = jax.random.PRNGKey(0)

    # state_shape['observation'].shape == (4, 16, 16) -> obs_dim = 1024
    # action_shape['a'].shape == (4,)                 -> act_dim = 4
    state_shape = (4, 16, 16)
    act_dim = 4
    obs_dim = 4 * 16 * 16

    params = init_params(jax.random.PRNGKey(0), obs_dim, act_dim)
    prepared = prepare_params(params)          # one-time bf16 cast + lane padding

    # batch=2  : single partial tile (small-batch path)
    # batch=37 : non-multiple-of-16 remainder, still one masked tile
    # batch=1050: multi-step grid (TM=512, partial last tile, core-parallel path)
    for batch in (2, 37, 1050):
        key, k_obs = jax.random.split(key)
        s = jax.random.normal(k_obs, (batch,) + state_shape, dtype=jnp.float32)

        logits, state = base_network_forward(s, prepared)
        logits = jax.block_until_ready(logits)

        assert logits.shape == (batch, act_dim)
        assert logits.dtype == jnp.float32
        assert state is None
        assert bool(jnp.all(jnp.isfinite(logits)))

        # Loose tolerance: weights/activations are bf16 in-kernel (f32 MXU accumulation).
        ref = _reference_forward(s, params)
        assert bool(jnp.allclose(logits, ref, rtol=0.1, atol=0.1)), (batch, logits[:4], ref[:4])

    print("KERNEL_OK")
</pallas_src>

<mosaic_0001>
module attributes {stable_mosaic.version = 11 : i64} {
  func.func @mlp_kernel(%arg0: i32, %arg1: memref<16x1024xf32, #tpu.memory_space<vmem>>, %arg2: memref<1024x256xbf16, #tpu.memory_space<vmem>>, %arg3: memref<1x256xbf16, #tpu.memory_space<vmem>>, %arg4: memref<256x256xbf16, #tpu.memory_space<vmem>>, %arg5: memref<1x256xbf16, #tpu.memory_space<vmem>>, %arg6: memref<256x128xbf16, #tpu.memory_space<vmem>>, %arg7: memref<1x128xbf16, #tpu.memory_space<vmem>>, %arg8: memref<128x128xbf16, #tpu.memory_space<vmem>>, %arg9: memref<1x128xf32, #tpu.memory_space<vmem>>, %arg10: memref<16x128xf32, #tpu.memory_space<vmem>>) attributes {dimension_semantics = [#tpu.dimension_semantics<arbitrary>], iteration_bounds = array<i64: 1>, scalar_prefetch = 0 : i64, scratch_operands = 0 : i64, tpu.core_type = #tpu.core_type<tc>, window_params = [{transform_indices = @transform_0, window_bounds = array<i64: 16, 1024>}, {pipeline_mode = #tpu.pipeline_mode<synchronous>, transform_indices = @transform_1, window_bounds = array<i64: 1024, 256>}, {pipeline_mode = #tpu.pipeline_mode<synchronous>, transform_indices = @transform_2, window_bounds = array<i64: 1, 256>}, {pipeline_mode = #tpu.pipeline_mode<synchronous>, transform_indices = @transform_3, window_bounds = array<i64: 256, 256>}, {pipeline_mode = #tpu.pipeline_mode<synchronous>, transform_indices = @transform_4, window_bounds = array<i64: 1, 256>}, {pipeline_mode = #tpu.pipeline_mode<synchronous>, transform_indices = @transform_5, window_bounds = array<i64: 256, 128>}, {pipeline_mode = #tpu.pipeline_mode<synchronous>, transform_indices = @transform_6, window_bounds = array<i64: 1, 128>}, {pipeline_mode = #tpu.pipeline_mode<synchronous>, transform_indices = @transform_7, window_bounds = array<i64: 128, 128>}, {pipeline_mode = #tpu.pipeline_mode<synchronous>, transform_indices = @transform_8, window_bounds = array<i64: 1, 128>}, {transform_indices = @transform_9, window_bounds = array<i64: 16, 128>}]} {
    %c0 = arith.constant 0 : index
    %c0_0 = arith.constant 0 : index
    %0 = vector.load %arg1[%c0, %c0_0] : memref<16x1024xf32, #tpu.memory_space<vmem>>, vector<16x1024xf32>
    %1 = arith.truncf %0 : vector<16x1024xf32> to vector<16x1024xbf16>
    %c0_1 = arith.constant 0 : index
    %c0_2 = arith.constant 0 : index
    %2 = vector.load %arg2[%c0_1, %c0_2] : memref<1024x256xbf16, #tpu.memory_space<vmem>>, vector<1024x256xbf16>
    %cst = arith.constant dense<0.000000e+00> : vector<16x256xf32>
    %3 = tpu.matmul %1, %2, %cst {dimension_numbers = #tpu.dot_dimension_numbers<[1], [0], [0], [1], [0, 0, 1, 1], [], []>} : vector<16x1024xbf16>, vector<1024x256xbf16>, vector<16x256xf32> -> vector<16x256xf32>
    %4 = arith.truncf %3 : vector<16x256xf32> to vector<16x256xbf16>
    %c0_3 = arith.constant 0 : index
    %c0_4 = arith.constant 0 : index
    %5 = vector.load %arg3[%c0_3, %c0_4] : memref<1x256xbf16, #tpu.memory_space<vmem>>, vector<1x256xbf16>
    %6 = vector.broadcast %5 : vector<1x256xbf16> to vector<16x256xbf16>
    %7 = arith.addf %4, %6 : vector<16x256xbf16>
    %cst_5 = arith.constant 0.000000e+00 : bf16
    %8 = vector.broadcast %cst_5 : bf16 to vector<16x256xbf16>
    %9 = arith.maximumf %7, %8 : vector<16x256xbf16>
    %c0_6 = arith.constant 0 : index
    %c0_7 = arith.constant 0 : index
    %10 = vector.load %arg4[%c0_6, %c0_7] : memref<256x256xbf16, #tpu.memory_space<vmem>>, vector<256x256xbf16>
    %cst_8 = arith.constant dense<0.000000e+00> : vector<16x256xf32>
    %11 = tpu.matmul %9, %10, %cst_8 {dimension_numbers = #tpu.dot_dimension_numbers<[1], [0], [0], [1], [0, 0, 1, 1], [], []>} : vector<16x256xbf16>, vector<256x256xbf16>, vector<16x256xf32> -> vector<16x256xf32>
    %12 = arith.truncf %11 : vector<16x256xf32> to vector<16x256xbf16>
    %c0_9 = arith.constant 0 : index
    %c0_10 = arith.constant 0 : index
    %13 = vector.load %arg5[%c0_9, %c0_10] : memref<1x256xbf16, #tpu.memory_space<vmem>>, vector<1x256xbf16>
    %14 = vector.broadcast %13 : vector<1x256xbf16> to vector<16x256xbf16>
    %15 = arith.addf %12, %14 : vector<16x256xbf16>
    %cst_11 = arith.constant 0.000000e+00 : bf16
    %16 = vector.broadcast %cst_11 : bf16 to vector<16x256xbf16>
    %17 = arith.maximumf %15, %16 : vector<16x256xbf16>
    %c0_12 = arith.constant 0 : index
    %c0_13 = arith.constant 0 : index
    %18 = vector.load %arg6[%c0_12, %c0_13] : memref<256x128xbf16, #tpu.memory_space<vmem>>, vector<256x128xbf16>
    %cst_14 = arith.constant dense<0.000000e+00> : vector<16x128xf32>
    %19 = tpu.matmul %17, %18, %cst_14 {dimension_numbers = #tpu.dot_dimension_numbers<[1], [0], [0], [1], [0, 0, 1, 1], [], []>} : vector<16x256xbf16>, vector<256x128xbf16>, vector<16x128xf32> -> vector<16x128xf32>
    %20 = arith.truncf %19 : vector<16x128xf32> to vector<16x128xbf16>
    %c0_15 = arith.constant 0 : index
    %c0_16 = arith.constant 0 : index
    %21 = vector.load %arg7[%c0_15, %c0_16] : memref<1x128xbf16, #tpu.memory_space<vmem>>, vector<1x128xbf16>
    %22 = vector.broadcast %21 : vector<1x128xbf16> to vector<16x128xbf16>
    %23 = arith.addf %20, %22 : vector<16x128xbf16>
    %cst_17 = arith.constant 0.000000e+00 : bf16
    %24 = vector.broadcast %cst_17 : bf16 to vector<16x128xbf16>
    %25 = arith.maximumf %23, %24 : vector<16x128xbf16>
    %c0_18 = arith.constant 0 : index
    %c0_19 = arith.constant 0 : index
    %26 = vector.load %arg8[%c0_18, %c0_19] : memref<128x128xbf16, #tpu.memory_space<vmem>>, vector<128x128xbf16>
    %cst_20 = arith.constant dense<0.000000e+00> : vector<16x128xf32>
    %27 = tpu.matmul %25, %26, %cst_20 {dimension_numbers = #tpu.dot_dimension_numbers<[1], [0], [0], [1], [0, 0, 1, 1], [], []>} : vector<16x128xbf16>, vector<128x128xbf16>, vector<16x128xf32> -> vector<16x128xf32>
    %c0_21 = arith.constant 0 : index
    %c0_22 = arith.constant 0 : index
    %28 = vector.load %arg9[%c0_21, %c0_22] : memref<1x128xf32, #tpu.memory_space<vmem>>, vector<1x128xf32>
    %29 = vector.broadcast %28 : vector<1x128xf32> to vector<16x128xf32>
    %30 = arith.addf %27, %29 : vector<16x128xf32>
    %c0_23 = arith.constant 0 : index
    %c0_24 = arith.constant 0 : index
    %31 = vector.load %arg10[%c0_23, %c0_24] : memref<16x128xf32, #tpu.memory_space<vmem>>, vector<16x128xf32>
    tpu.vector_store %arg10[%c0_23, %c0_24], %30 {strides = array<i32>} : memref<16x128xf32, #tpu.memory_space<vmem>>, vector<16x128xf32>,
    return
  }
  func.func @transform_0(%arg0: i32) -> (i32, i32) {
    %c0_i32 = arith.constant 0 : i32
    %c0_i32_0 = arith.constant 0 : i32
    return %arg0, %c0_i32 : i32, i32
  }
  func.func @transform_1(%arg0: i32) -> (i32, i32) {
    %c0_i32 = arith.constant 0 : i32
    %c0_i32_0 = arith.constant 0 : i32
    %c0_i32_1 = arith.constant 0 : i32
    return %c0_i32, %c0_i32_0 : i32, i32
  }
  func.func @transform_2(%arg0: i32) -> (i32, i32) {
    %c0_i32 = arith.constant 0 : i32
    %c0_i32_0 = arith.constant 0 : i32
    %c0_i32_1 = arith.constant 0 : i32
    return %c0_i32, %c0_i32_0 : i32, i32
  }
  func.func @transform_3(%arg0: i32) -> (i32, i32) {
    %c0_i32 = arith.constant 0 : i32
    %c0_i32_0 = arith.constant 0 : i32
    %c0_i32_1 = arith.constant 0 : i32
    return %c0_i32, %c0_i32_0 : i32, i32
  }
  func.func @transform_4(%arg0: i32) -> (i32, i32) {
    %c0_i32 = arith.constant 0 : i32
    %c0_i32_0 = arith.constant 0 : i32
    %c0_i32_1 = arith.constant 0 : i32
    return %c0_i32, %c0_i32_0 : i32, i32
  }
  func.func @transform_5(%arg0: i32) -> (i32, i32) {
    %c0_i32 = arith.constant 0 : i32
    %c0_i32_0 = arith.constant 0 : i32
    %c0_i32_1 = arith.constant 0 : i32
    return %c0_i32, %c0_i32_0 : i32, i32
  }
  func.func @transform_6(%arg0: i32) -> (i32, i32) {
    %c0_i32 = arith.constant 0 : i32
    %c0_i32_0 = arith.constant 0 : i32
    %c0_i32_1 = arith.constant 0 : i32
    return %c0_i32, %c0_i32_0 : i32, i32
  }
  func.func @transform_7(%arg0: i32) -> (i32, i32) {
    %c0_i32 = arith.constant 0 : i32
    %c0_i32_0 = arith.constant 0 : i32
    %c0_i32_1 = arith.constant 0 : i32
    return %c0_i32, %c0_i32_0 : i32, i32
  }
  func.func @transform_8(%arg0: i32) -> (i32, i32) {
    %c0_i32 = arith.constant 0 : i32
    %c0_i32_0 = arith.constant 0 : i32
    %c0_i32_1 = arith.constant 0 : i32
    return %c0_i32, %c0_i32_0 : i32, i32
  }
  func.func @transform_9(%arg0: i32) -> (i32, i32) {
    %c0_i32 = arith.constant 0 : i32
    %c0_i32_0 = arith.constant 0 : i32
    return %arg0, %c0_i32 : i32, i32
  }
}

</mosaic_0001>

<llo_original>
// kernel: tpu_custom_call.1
$region0: #{tpu_custom_call.1}
  #allocation0 [shape = 'u32[]', space=smem, size = 0x4, offset = 0x4, fixed_abs, tag = 'smem constant byte address 0x4 - core index']
  #allocation1 [shape = 'u32[144,128]{1,0:T(1,128)}', space=vmem, size = 0x12000, scoped, tag = 'internal scratch']
  %s0 = inlined_call_operand.hbm [shape: f32[2,1024], index: 0, kind: input, shape index: {}]
  %s1 = inlined_call_operand.hbm [shape: bf16[1024,256], index: 1, kind: input, shape index: {}]
  %s2 = inlined_call_operand.vmem [shape: bf16[1,256], index: 2, kind: input, shape index: {}]
  %s3 = inlined_call_operand.hbm [shape: bf16[256,256], index: 3, kind: input, shape index: {}]
  %s4 = inlined_call_operand.vmem [shape: bf16[1,256], index: 4, kind: input, shape index: {}]
  %s5 = inlined_call_operand.hbm [shape: bf16[256,128], index: 5, kind: input, shape index: {}]
  %s6 = inlined_call_operand.vmem [shape: bf16[1,128], index: 6, kind: input, shape index: {}]
  %s7 = inlined_call_operand.hbm [shape: bf16[128,128], index: 7, kind: input, shape index: {}]
  %s8 = inlined_call_operand.vmem [shape: f32[1,128], index: 8, kind: input, shape index: {}]
  %s9 = inlined_call_operand.hbm [shape: f32[2,128], index: 9, kind: output, shape index: {}]
  %s10 = sld [smem:[#allocation0]]
  $region66: #{tpu_custom_call.1} parent=0
    _
  %s12 = ssub.s32 1, %s10
  %s13 = scalar_select 0, %s12, %s10
  $region1: #{tpu_custom_call.1} parent=0
    #allocation2 [shape = 'u8[65536]{0}', space=vmem, size = 0x10000, scoped, tag = 'input window, operand 0, single buffered']
    #allocation3 [shape = 's32[1]{0}', space=sflag, size = 0x4, scoped, tag = 'scoped memory for tpu_custom_call.1']
    #allocation4 [shape = 's32[1]{0}', space=sflag, size = 0x4, scoped, tag = 'scoped memory for tpu_custom_call.1']
    #allocation5 [shape = 'u8[524288]{0}', space=vmem, size = 0x80000, scoped, tag = 'input window, operand 1, single buffered']
    #allocation6 [shape = 's32[1]{0}', space=sflag, size = 0x4, scoped, tag = 'scoped memory for tpu_custom_call.1']
    #allocation7 [shape = 'u8[131072]{0}', space=vmem, size = 0x20000, scoped, tag = 'input window, operand 3, single buffered']
    #allocation8 [shape = 'u8[65536]{0}', space=vmem, size = 0x10000, scoped, tag = 'input window, operand 5, single buffered']
    #allocation9 [shape = 's32[1]{0}', space=sflag, size = 0x4, scoped, tag = 'scoped memory for tpu_custom_call.1']
    #allocation10 [shape = 'u8[32768]{0}', space=vmem, size = 0x8000, scoped, tag = 'input window, operand 7, single buffered']
    #allocation11 [shape = 'u8[8192]{0}', space=vmem, size = 0x2000, scoped, tag = 'output window, operand 0, single buffered']
    %14 = vsyncpa [#allocation3], 0
    %15 = vsyncpa [#allocation6], 0
    %16 = vsyncpa [#allocation9], 0
    %17 = vsyncpa [#allocation4], 0
    // Predicated region
    $region2: #{tpu_custom_call.1} parent=1 // pred_check
      _
    $region3: #{tpu_custom_call.1} parent=1 // pred_check_branch
      %19 = sbr.rel (0) target = $region5
    $region4: #{tpu_custom_call.1} parent=1 // pred_region
      %s21 = ssub.s32 2048, 256
      %22 = vsyncadd [#allocation3], %s21
      %s23 = sshll.u32 [#allocation2], 4
      %s24 = int_to_ptr.vmem [resolvable:$true] %s23
      %29 = dma.hbm_to_vmem [thread:$0]  %s0, 256, %s24, [#allocation3], 256, 256, 16
    $region5: #{tpu_custom_call.1} parent=1 // pred_fallthru
      _
    // Predicated region
    $region6: #{tpu_custom_call.1} parent=1 // pred_check
      _
    $region7: #{tpu_custom_call.1} parent=1 // pred_check_branch
      %31 = sbr.rel (0) target = $region9
    $region8: #{tpu_custom_call.1} parent=1 // pred_region
      %s33 = ssub.s32 16384, 16384
      %34 = vsyncadd [#allocation6], %s33
      %s35 = sshll.u32 [#allocation5], 4
      %s36 = int_to_ptr.vmem [resolvable:$true] %s35
      %41 = dma.hbm_to_vmem [thread:$0]  %s1, 16384, %s36, [#allocation6], 128, 128, 8
    $region9: #{tpu_custom_call.1} parent=1 // pred_fallthru
      _
    // Predicated region
    $region10: #{tpu_custom_call.1} parent=1 // pred_check
      _
    $region11: #{tpu_custom_call.1} parent=1 // pred_check_branch
      %43 = sbr.rel (0) target = $region13
    $region12: #{tpu_custom_call.1} parent=1 // pred_region
      _
    $region13: #{tpu_custom_call.1} parent=1 // pred_fallthru
      _
    // Predicated region
    $region14: #{tpu_custom_call.1} parent=1 // pred_check
      _
    $region15: #{tpu_custom_call.1} parent=1 // pred_check_branch
      %45 = sbr.rel (0) target = $region17
    $region16: #{tpu_custom_call.1} parent=1 // pred_region
      %s47 = ssub.s32 4096, 4096
      %48 = vsyncadd [#allocation6], %s47
      %s49 = sshll.u32 [#allocation7], 4
      %s50 = int_to_ptr.vmem [resolvable:$true] %s49
      %55 = dma.hbm_to_vmem [thread:$0]  %s3, 4096, %s50, [#allocation6], 128, 128, 8
    $region17: #{tpu_custom_call.1} parent=1 // pred_fallthru
      _
    // Predicated region
    $region18: #{tpu_custom_call.1} parent=1 // pred_check
      _
    $region19: #{tpu_custom_call.1} parent=1 // pred_check_branch
      %57 = sbr.rel (0) target = $region21
    $region20: #{tpu_custom_call.1} parent=1 // pred_region
      _
    $region21: #{tpu_custom_call.1} parent=1 // pred_fallthru
      _
    // Predicated region
    $region22: #{tpu_custom_call.1} parent=1 // pred_check
      _
    $region23: #{tpu_custom_call.1} parent=1 // pred_check_branch
      %59 = sbr.rel (0) target = $region25
    $region24: #{tpu_custom_call.1} parent=1 // pred_region
      %s61 = ssub.s32 2048, 2048
      %62 = vsyncadd [#allocation9], %s61
      %s63 = sshll.u32 [#allocation8], 4
      %s64 = int_to_ptr.vmem [resolvable:$true] %s63
      %69 = dma.hbm_to_vmem [thread:$0]  %s5, 2048, %s64, [#allocation9], 64, 64, 4
    $region25: #{tpu_custom_call.1} parent=1 // pred_fallthru
      _
    // Predicated region
    $region26: #{tpu_custom_call.1} parent=1 // pred_check
      _
    $region27: #{tpu_custom_call.1} parent=1 // pred_check_branch
      %71 = sbr.rel (0) target = $region29
    $region28: #{tpu_custom_call.1} parent=1 // pred_region
      _
    $region29: #{tpu_custom_call.1} parent=1 // pred_fallthru
      _
    // Predicated region
    $region30: #{tpu_custom_call.1} parent=1 // pred_check
      _
    $region31: #{tpu_custom_call.1} parent=1 // pred_check_branch
      %73 = sbr.rel (0) target = $region33
    $region32: #{tpu_custom_call.1} parent=1 // pred_region
      %s75 = ssub.s32 1024, 1024
      %76 = vsyncadd [#allocation9], %s75
      %s77 = sshll.u32 [#allocation10], 4
      %s78 = int_to_ptr.vmem [resolvable:$true] %s77
      %83 = dma.hbm_to_vmem [thread:$0]  %s7, 1024, %s78, [#allocation9], 64, 64, 4
    $region33: #{tpu_custom_call.1} parent=1 // pred_fallthru
      _
    // Predicated region
    $region34: #{tpu_custom_call.1} parent=1 // pred_check
      _
    $region35: #{tpu_custom_call.1} parent=1 // pred_check_branch
      %85 = sbr.rel (0) target = $region37
    $region36: #{tpu_custom_call.1} parent=1 // pred_region
      _
    $region37: #{tpu_custom_call.1} parent=1 // pred_fallthru
      _
    // Predicated region
    $region38: #{tpu_custom_call.1} parent=1 // pred_check
      _
    $region39: #{tpu_custom_call.1} parent=1 // pred_check_branch
      %87 = sbr.rel (0) target = $region41
    $region40: #{tpu_custom_call.1} parent=1 // pred_region
      %88 = dma.done [#allocation3], 2048
    $region41: #{tpu_custom_call.1} parent=1 // pred_fallthru
      _
    // Predicated region
    $region42: #{tpu_custom_call.1} parent=1 // pred_check
      _
    $region43: #{tpu_custom_call.1} parent=1 // pred_check_branch
      %90 = sbr.rel (0) target = $region45
    $region44: #{tpu_custom_call.1} parent=1 // pred_region
      %91 = dma.done [#allocation6], 16384
    $region45: #{tpu_custom_call.1} parent=1 // pred_fallthru
      _
    // Predicated region
    $region46: #{tpu_custom_call.1} parent=1 // pred_check
      _
    $region47: #{tpu_custom_call.1} parent=1 // pred_check_branch
      %93 = sbr.rel (0) target = $region49
    $region48: #{tpu_custom_call.1} parent=1 // pred_region
      %94 = dma.done [#allocation6], 4096
    $region49: #{tpu_custom_call.1} parent=1 // pred_fallthru
      _
    // Predicated region
    $region50: #{tpu_custom_call.1} parent=1 // pred_check
      _
    $region51: #{tpu_custom_call.1} parent=1 // pred_check_branch
      %96 = sbr.rel (0) target = $region53
    $region52: #{tpu_custom_call.1} parent=1 // pred_region
      %97 = dma.done [#allocation9], 2048
    $region53: #{tpu_custom_call.1} parent=1 // pred_fallthru
      _
    // Predicated region
    $region54: #{tpu_custom_call.1} parent=1 // pred_check
      _
    $region55: #{tpu_custom_call.1} parent=1 // pred_check_branch
      %99 = sbr.rel (0) target = $region57
    $region56: #{tpu_custom_call.1} parent=1 // pred_region
      %100 = dma.done [#allocation9], 1024
    $region57: #{tpu_custom_call.1} parent=1 // pred_fallthru
      _
    %v102 = vld [vmem:[#allocation2] sm:$0xff]
    %v103 = vld [vmem:[#allocation2 + $0x8] sm:$0xff]
    %v104 = vld [vmem:[#allocation2 + $0x10] sm:$0xff]
    %v105 = vld [vmem:[#allocation2 + $0x18] sm:$0xff]
    %v106 = vld [vmem:[#allocation2 + $0x20] sm:$0xff]
    %v107 = vld [vmem:[#allocation2 + $0x28] sm:$0xff]
    %v108 = vld [vmem:[#allocation2 + $0x30] sm:$0xff]
    %v109 = vld [vmem:[#allocation2 + $0x38] sm:$0xff]
    %v110 = vld [vmem:[#allocation2 + $0x40] sm:$0xff]
    %v111 = vld [vmem:[#allocation2 + $0x48] sm:$0xff]
    %v112 = vld [vmem:[#allocation2 + $0x50] sm:$0xff]
    %v113 = vld [vmem:[#allocation2 + $0x58] sm:$0xff]
    %v114 = vld [vmem:[#allocation2 + $0x60] sm:$0xff]
    %v115 = vld [vmem:[#allocation2 + $0x68] sm:$0xff]
    %v116 = vld [vmem:[#allocation2 + $0x70] sm:$0xff]
    %v117 = vld [vmem:[#allocation2 + $0x78] sm:$0xff]
    %v134 = vcombine.low %v102, %v104
    %v135 = vcombine.high %v102, %v104
    %v136 = vcombine.low %v106, %v108
    %v137 = vcombine.high %v106, %v108
    %v139 = vunpack.c.l.s4 1983009808
    %v140 = vunpack.c.0.s8 %v139
    %v141 = vlaneseq
    %v142 = vshrl.u32 %v141, 7
    %v143 = vsub.s32 %v140, %v142
    %v144 = vrot.slane %v134, %v143
    %v146 = vunpack.c.l.s4 1983009808
    %v147 = vunpack.c.0.s8 %v146
    %v148 = vlaneseq
    %v149 = vshrl.u32 %v148, 7
    %v150 = vsub.s32 %v147, %v149
    %v151 = vrot.slane %v135, %v150
    %v153 = vunpack.c.l.s4 1983009808
    %v154 = vunpack.c.0.s8 %v153
    %v155 = vlaneseq
    %v156 = vshrl.u32 %v155, 7
    %v157 = vsub.s32 %v154, %v156
    %v158 = vrot.slane %v136, %v157
    %v160 = vunpack.c.l.s4 1983009808
    %v161 = vunpack.c.0.s8 %v160
    %v162 = vlaneseq
    %v163 = vshrl.u32 %v162, 7
    %v164 = vsub.s32 %v161, %v163
    %v165 = vrot.slane %v137, %v164
    %v166 = vcombine.low %v144, %v158
    %v167 = vcombine.high %v144, %v158
    %v168 = vcombine.low %v151, %v165
    %v169 = vcombine.high %v151, %v165
    %v170 = vcombine.low %v103, %v105
    %v171 = vcombine.high %v103, %v105
    %v172 = vcombine.low %v107, %v109
    %v173 = vcombine.high %v107, %v109
    %v175 = vunpack.c.l.s4 1983009808
    %v176 = vunpack.c.0.s8 %v175
    %v177 = vlaneseq
    %v178 = vshrl.u32 %v177, 7
    %v179 = vsub.s32 %v176, %v178
    %v180 = vrot.slane %v170, %v179
    %v182 = vunpack.c.l.s4 1983009808
    %v183 = vunpack.c.0.s8 %v182
    %v184 = vlaneseq
    %v185 = vshrl.u32 %v184, 7
    %v186 = vsub.s32 %v183, %v185
    %v187 = vrot.slane %v171, %v186
    %v189 = vunpack.c.l.s4 1983009808
    %v190 = vunpack.c.0.s8 %v189
    %v191 = vlaneseq
    %v192 = vshrl.u32 %v191, 7
    %v193 = vsub.s32 %v190, %v192
    %v194 = vrot.slane %v172, %v193
    %v196 = vunpack.c.l.s4 1983009808
    %v197 = vunpack.c.0.s8 %v196
    %v198 = vlaneseq
    %v199 = vshrl.u32 %v198, 7
    %v200 = vsub.s32 %v197, %v199
    %v201 = vrot.slane %v173, %v200
    %v202 = vcombine.low %v180, %v194
    %v203 = vcombine.high %v180, %v194
    %v204 = vcombine.low %v187, %v201
    %v205 = vcombine.high %v187, %v201
    %v206 = vcombine.low %v110, %v112
    %v207 = vcombine.high %v110, %v112
    %v208 = vcombine.low %v114, %v116
    %v209 = vcombine.high %v114, %v116
    %v211 = vunpack.c.l.s4 1983009808
    %v212 = vunpack.c.0.s8 %v211
    %v213 = vlaneseq
    %v214 = vshrl.u32 %v213, 7
    %v215 = vsub.s32 %v212, %v214
    %v216 = vrot.slane %v206, %v215
    %v218 = vunpack.c.l.s4 1983009808
    %v219 = vunpack.c.0.s8 %v218
    %v220 = vlaneseq
    %v221 = vshrl.u32 %v220, 7
    %v222 = vsub.s32 %v219, %v221
    %v223 = vrot.slane %v207, %v222
    %v225 = vunpack.c.l.s4 1983009808
    %v226 = vunpack.c.0.s8 %v225
    %v227 = vlaneseq
    %v228 = vshrl.u32 %v227, 7
    %v229 = vsub.s32 %v226, %v228
    %v230 = vrot.slane %v208, %v229
    %v232 = vunpack.c.l.s4 1983009808
    %v233 = vunpack.c.0.s8 %v232
    %v234 = vlaneseq
    %v235 = vshrl.u32 %v234, 7
    %v236 = vsub.s32 %v233, %v235
    %v237 = vrot.slane %v209, %v236
    %v238 = vcombine.low %v216, %v230
    %v239 = vcombine.high %v216, %v230
    %v240 = vcombine.low %v223, %v237
    %v241 = vcombine.high %v223, %v237
    %v242 = vcombine.low %v111, %v113
    %v243 = vcombine.high %v111, %v113
    %v244 = vcombine.low %v115, %v117
    %v245 = vcombine.high %v115, %v117
    %v247 = vunpack.c.l.s4 1983009808
    %v248 = vunpack.c.0.s8 %v247
    %v249 = vlaneseq
    %v250 = vshrl.u32 %v249, 7
    %v251 = vsub.s32 %v248, %v250
    %v252 = vrot.slane %v242, %v251
    %v254 = vunpack.c.l.s4 1983009808
    %v255 = vunpack.c.0.s8 %v254
    %v256 = vlaneseq
    %v257 = vshrl.u32 %v256, 7
    %v258 = vsub.s32 %v255, %v257
    %v259 = vrot.slane %v243, %v258
    %v261 = vunpack.c.l.s4 1983009808
    %v262 = vunpack.c.0.s8 %v261
    %v263 = vlaneseq
    %v264 = vshrl.u32 %v263, 7
    %v265 = vsub.s32 %v262, %v264
    %v266 = vrot.slane %v244, %v265
    %v268 = vunpack.c.l.s4 1983009808
    %v269 = vunpack.c.0.s8 %v268
    %v270 = vlaneseq
    %v271 = vshrl.u32 %v270, 7
    %v272 = vsub.s32 %v269, %v271
    %v273 = vrot.slane %v245, %v272
    %v274 = vcombine.low %v252, %v266
    %v275 = vcombine.high %v252, %v266
    %v276 = vcombine.low %v259, %v273
    %v277 = vcombine.high %v259, %v273
    %v294 = vpack.c.bf16 %v238, %v166
    %v295 = vpack.c.bf16 %v239, %v167
    %v296 = vpack.c.bf16 %v240, %v168
    %v297 = vpack.c.bf16 %v241, %v169
    %v298 = vpack.c.bf16 %v274, %v202
    %v299 = vpack.c.bf16 %v275, %v203
    %v300 = vpack.c.bf16 %v276, %v204
    %v301 = vpack.c.bf16 %v277, %v205
    %v302 = vld [vmem:[#allocation5] sm:$0xff]
    %v303 = vld [vmem:[#allocation5 + $0x8] sm:$0xff]
    %v304 = vld [vmem:[#allocation5 + $0x10] sm:$0xff]
    %v305 = vld [vmem:[#allocation5 + $0x18] sm:$0xff]
    %v306 = vld [vmem:[#allocation5 + $0x20] sm:$0xff]
    %v307 = vld [vmem:[#allocation5 + $0x28] sm:$0xff]
    %v308 = vld [vmem:[#allocation5 + $0x30] sm:$0xff]
    %v309 = vld [vmem:[#allocation5 + $0x38] sm:$0xff]
    %v310 = vld [vmem:[#allocation5 + $0x40] sm:$0xff]
    %v311 = vld [vmem:[#allocation5 + $0x48] sm:$0xff]
    %v312 = vld [vmem:[#allocation5 + $0x50] sm:$0xff]
    %v313 = vld [vmem:[#allocation5 + $0x58] sm:$0xff]
    %v314 = vld [vmem:[#allocation5 + $0x60] sm:$0xff]
    %v315 = vld [vmem:[#allocation5 + $0x68] sm:$0xff]
    %v316 = vld [vmem:[#allocation5 + $0x70] sm:$0xff]
    %v317 = vld [vmem:[#allocation5 + $0x78] sm:$0xff]
    %v318 = vld [vmem:[#allocation5 + $0x80] sm:$0xff]
    %v319 = vld [vmem:[#allocation5 + $0x88] sm:$0xff]
    %v320 = vld [vmem:[#allocation5 + $0x90] sm:$0xff]
    %v321 = vld [vmem:[#allocation5 + $0x98] sm:$0xff]
    %v322 = vld [vmem:[#allocation5 + $0xa0] sm:$0xff]
    %v323 = vld [vmem:[#allocation5 + $0xa8] sm:$0xff]
    %v324 = vld [vmem:[#allocation5 + $0xb0] sm:$0xff]
    %v325 = vld [vmem:[#allocation5 + $0xb8] sm:$0xff]
    %v326 = vld [vmem:[#allocation5 + $0xc0] sm:$0xff]
    %v327 = vld [vmem:[#allocation5 + $0xc8] sm:$0xff]
    %v328 = vld [vmem:[#allocation5 + $0xd0] sm:$0xff]
    %v329 = vld [vmem:[#allocation5 + $0xd8] sm:$0xff]
    %v330 = vld [vmem:[#allocation5 + $0xe0] sm:$0xff]
    %v331 = vld [vmem:[#allocation5 + $0xe8] sm:$0xff]
    %v332 = vld [vmem:[#allocation5 + $0xf0] sm:$0xff]
    %v333 = vld [vmem:[#allocation5 + $0xf8] sm:$0xff]
    %v334 = vld [vmem:[#allocation5 + $0x100] sm:$0xff]
    %v335 = vld [vmem:[#allocation5 + $0x108] sm:$0xff]
    %v336 = vld [vmem:[#allocation5 + $0x110] sm:$0xff]
    %v337 = vld [vmem:[#allocation5 + $0x118] sm:$0xff]
    %v338 = vld [vmem:[#allocation5 + $0x120] sm:$0xff]
    %v339 = vld [vmem:[#allocation5 + $0x128] sm:$0xff]
    %v340 = vld [vmem:[#allocation5 + $0x130] sm:$0xff]
    %v341 = vld [vmem:[#allocation5 + $0x138] sm:$0xff]
    %v342 = vld [vmem:[#allocation5 + $0x140] sm:$0xff]
    %v343 = vld [vmem:[#allocation5 + $0x148] sm:$0xff]
    %v344 = vld [vmem:[#allocation5 + $0x150] sm:$0xff]
    %v345 = vld [vmem:[#allocation5 + $0x158] sm:$0xff]
    %v346 = vld [vmem:[#allocation5 + $0x160] sm:$0xff]
    %v347 = vld [vmem:[#allocation5 + $0x168] sm:$0xff]
    %v348 = vld [vmem:[#allocation5 + $0x170] sm:$0xff]
    %v349 = vld [vmem:[#allocation5 + $0x178] sm:$0xff]
    %v350 = vld [vmem:[#allocation5 + $0x180] sm:$0xff]
    %v351 = vld [vmem:[#allocation5 + $0x188] sm:$0xff]
    %v352 = vld [vmem:[#allocation5 + $0x190] sm:$0xff]
    %v353 = vld [vmem:[#allocation5 + $0x198] sm:$0xff]
    %v354 = vld [vmem:[#allocation5 + $0x1a0] sm:$0xff]
    %v355 = vld [vmem:[#allocation5 + $0x1a8] sm:$0xff]
    %v356 = vld [vmem:[#allocation5 + $0x1b0] sm:$0xff]
    %v357 = vld [vmem:[#allocation5 + $0x1b8] sm:$0xff]
    %v358 = vld [vmem:[#allocation5 + $0x1c0] sm:$0xff]
    %v359 = vld [vmem:[#allocation5 + $0x1c8] sm:$0xff]
    %v360 = vld [vmem:[#allocation5 + $0x1d0] sm:$0xff]
    %v361 = vld [vmem:[#allocation5 + $0x1d8] sm:$0xff]
    %v362 = vld [vmem:[#allocation5 + $0x1e0] sm:$0xff]
    %v363 = vld [vmem:[#allocation5 + $0x1e8] sm:$0xff]
    %v364 = vld [vmem:[#allocation5 + $0x1f0] sm:$0xff]
    %v365 = vld [vmem:[#allocation5 + $0x1f8] sm:$0xff]
    %v366 = vld [vmem:[#allocation5 + $0x200] sm:$0xff]
    %v367 = vld [vmem:[#allocation5 + $0x208] sm:$0xff]
    %v368 = vld [vmem:[#allocation5 + $0x210] sm:$0xff]
    %v369 = vld [vmem:[#allocation5 + $0x218] sm:$0xff]
    %v370 = vld [vmem:[#allocation5 + $0x220] sm:$0xff]
    %v371 = vld [vmem:[#allocation5 + $0x228] sm:$0xff]
    %v372 = vld [vmem:[#allocation5 + $0x230] sm:$0xff]
    %v373 = vld [vmem:[#allocation5 + $0x238] sm:$0xff]
    %v374 = vld [vmem:[#allocation5 + $0x240] sm:$0xff]
    %v375 = vld [vmem:[#allocation5 + $0x248] sm:$0xff]
    %v376 = vld [vmem:[#allocation5 + $0x250] sm:$0xff]
    %v377 = vld [vmem:[#allocation5 + $0x258] sm:$0xff]
    %v378 = vld [vmem:[#allocation5 + $0x260] sm:$0xff]
    %v379 = vld [vmem:[#allocation5 + $0x268] sm:$0xff]
    %v380 = vld [vmem:[#allocation5 + $0x270] sm:$0xff]
    %v381 = vld [vmem:[#allocation5 + $0x278] sm:$0xff]
    %v382 = vld [vmem:[#allocation5 + $0x280] sm:$0xff]
    %v383 = vld [vmem:[#allocation5 + $0x288] sm:$0xff]
    %v384 = vld [vmem:[#allocation5 + $0x290] sm:$0xff]
    %v385 = vld [vmem:[#allocation5 + $0x298] sm:$0xff]
    %v386 = vld [vmem:[#allocation5 + $0x2a0] sm:$0xff]
    %v387 = vld [vmem:[#allocation5 + $0x2a8] sm:$0xff]
    %v388 = vld [vmem:[#allocation5 + $0x2b0] sm:$0xff]
    %v389 = vld [vmem:[#allocation5 + $0x2b8] sm:$0xff]
    %v390 = vld [vmem:[#allocation5 + $0x2c0] sm:$0xff]
    %v391 = vld [vmem:[#allocation5 + $0x2c8] sm:$0xff]
    %v392 = vld [vmem:[#allocation5 + $0x2d0] sm:$0xff]
    %v393 = vld [vmem:[#allocation5 + $0x2d8] sm:$0xff]
    %v394 = vld [vmem:[#allocation5 + $0x2e0] sm:$0xff]
    %v395 = vld [vmem:[#allocation5 + $0x2e8] sm:$0xff]
    %v396 = vld [vmem:[#allocation5 + $0x2f0] sm:$0xff]
    %v397 = vld [vmem:[#allocation5 + $0x2f8] sm:$0xff]
    %v398 = vld [vmem:[#allocation5 + $0x300] sm:$0xff]
    %v399 = vld [vmem:[#allocation5 + $0x308] sm:$0xff]
    %v400 = vld [vmem:[#allocation5 + $0x310] sm:$0xff]
    %v401 = vld [vmem:[#allocation5 + $0x318] sm:$0xff]
    %v402 = vld [vmem:[#allocation5 + $0x320] sm:$0xff]
    %v403 = vld [vmem:[#allocation5 + $0x328] sm:$0xff]
    %v404 = vld [vmem:[#allocation5 + $0x330] sm:$0xff]
    %v405 = vld [vmem:[#allocation5 + $0x338] sm:$0xff]
    %v406 = vld [vmem:[#allocation5 + $0x340] sm:$0xff]
    %v407 = vld [vmem:[#allocation5 + $0x348] sm:$0xff]
    %v408 = vld [vmem:[#allocation5 + $0x350] sm:$0xff]
    %v409 = vld [vmem:[#allocation5 + $0x358] sm:$0xff]
    %v410 = vld [vmem:[#allocation5 + $0x360] sm:$0xff]
    %v411 = vld [vmem:[#allocation5 + $0x368] sm:$0xff]
    %v412 = vld [vmem:[#allocation5 + $0x370] sm:$0xff]
    %v413 = vld [vmem:[#allocation5 + $0x378] sm:$0xff]
    %v414 = vld [vmem:[#allocation5 + $0x380] sm:$0xff]
    %v415 = vld [vmem:[#allocation5 + $0x388] sm:$0xff]
    %v416 = vld [vmem:[#allocation5 + $0x390] sm:$0xff]
    %v417 = vld [vmem:[#allocation5 + $0x398] sm:$0xff]
    %v418 = vld [vmem:[#allocation5 + $0x3a0] sm:$0xff]
    %v419 = vld [vmem:[#allocation5 + $0x3a8] sm:$0xff]
    %v420 = vld [vmem:[#allocation5 + $0x3b0] sm:$0xff]
    %v421 = vld [vmem:[#allocation5 + $0x3b8] sm:$0xff]
    %v422 = vld [vmem:[#allocation5 + $0x3c0] sm:$0xff]
    %v423 = vld [vmem:[#allocation5 + $0x3c8] sm:$0xff]
    %v424 = vld [vmem:[#allocation5 + $0x3d0] sm:$0xff]
    %v425 = vld [vmem:[#allocation5 + $0x3d8] sm:$0xff]
    %v426 = vld [vmem:[#allocation5 + $0x3e0] sm:$0xff]
    %v427 = vld [vmem:[#allocation5 + $0x3e8] sm:$0xff]
    %v428 = vld [vmem:[#allocation5 + $0x3f0] sm:$0xff]
    %v429 = vld [vmem:[#allocation5 + $0x3f8] sm:$0xff]
    %v558 = vunpack.c.l.b16 %v302
    %v559 = vunpack.c.h.b16 %v302
    %v560 = vunpack.c.l.b16 %v303
    %v561 = vunpack.c.h.b16 %v303
    %v562 = vunpack.c.l.b16 %v304
    %v563 = vunpack.c.h.b16 %v304
    %v564 = vunpack.c.l.b16 %v305
    %v565 = vunpack.c.h.b16 %v305
    %v566 = vunpack.c.l.b16 %v306
    %v567 = vunpack.c.h.b16 %v306
    %v568 = vunpack.c.l.b16 %v307
    %v569 = vunpack.c.h.b16 %v307
    %v570 = vunpack.c.l.b16 %v308
    %v571 = vunpack.c.h.b16 %v308
    %v572 = vunpack.c.l.b16 %v309
    %v573 = vunpack.c.h.b16 %v309
    %v574 = vunpack.c.l.b16 %v310
    %v575 = vunpack.c.h.b16 %v310
    %v576 = vunpack.c.l.b16 %v311
    %v577 = vunpack.c.h.b16 %v311
    %v578 = vunpack.c.l.b16 %v312
    %v579 = vunpack.c.h.b16 %v312
    %v580 = vunpack.c.l.b16 %v313
    %v581 = vunpack.c.h.b16 %v313
    %v582 = vunpack.c.l.b16 %v314
    %v583 = vunpack.c.h.b16 %v314
    %v584 = vunpack.c.l.b16 %v315
    %v585 = vunpack.c.h.b16 %v315
    %v586 = vunpack.c.l.b16 %v316
    %v587 = vunpack.c.h.b16 %v316
    %v588 = vunpack.c.l.b16 %v317
    %v589 = vunpack.c.h.b16 %v317
    %v590 = vunpack.c.l.b16 %v318
    %v591 = vunpack.c.h.b16 %v318
    %v592 = vunpack.c.l.b16 %v319
    %v593 = vunpack.c.h.b16 %v319
    %v594 = vunpack.c.l.b16 %v320
    %v595 = vunpack.c.h.b16 %v320
    %v596 = vunpack.c.l.b16 %v321
    %v597 = vunpack.c.h.b16 %v321
    %v598 = vunpack.c.l.b16 %v322
    %v599 = vunpack.c.h.b16 %v322
    %v600 = vunpack.c.l.b16 %v323
    %v601 = vunpack.c.h.b16 %v323
    %v602 = vunpack.c.l.b16 %v324
    %v603 = vunpack.c.h.b16 %v324
    %v604 = vunpack.c.l.b16 %v325
    %v605 = vunpack.c.h.b16 %v325
    %v606 = vunpack.c.l.b16 %v326
    %v607 = vunpack.c.h.b16 %v326
    %v608 = vunpack.c.l.b16 %v327
    %v609 = vunpack.c.h.b16 %v327
    %v610 = vunpack.c.l.b16 %v328
    %v611 = vunpack.c.h.b16 %v328
    %v612 = vunpack.c.l.b16 %v329
    %v613 = vunpack.c.h.b16 %v329
    %v614 = vunpack.c.l.b16 %v330
    %v615 = vunpack.c.h.b16 %v330
    %v616 = vunpack.c.l.b16 %v331
    %v617 = vunpack.c.h.b16 %v331
    %v618 = vunpack.c.l.b16 %v332
    %v619 = vunpack.c.h.b16 %v332
    %v620 = vunpack.c.l.b16 %v333
    %v621 = vunpack.c.h.b16 %v333
    %v622 = vunpack.c.l.b16 %v334
    %v623 = vunpack.c.h.b16 %v334
    %v624 = vunpack.c.l.b16 %v335
    %v625 = vunpack.c.h.b16 %v335
    %v626 = vunpack.c.l.b16 %v336
    %v627 = vunpack.c.h.b16 %v336
    %v628 = vunpack.c.l.b16 %v337
    %v629 = vunpack.c.h.b16 %v337
    %v630 = vunpack.c.l.b16 %v338
    %v631 = vunpack.c.h.b16 %v338
    %v632 = vunpack.c.l.b16 %v339
    %v633 = vunpack.c.h.b16 %v339
    %v634 = vunpack.c.l.b16 %v340
    %v635 = vunpack.c.h.b16 %v340
    %v636 = vunpack.c.l.b16 %v341
    %v637 = vunpack.c.h.b16 %v341
    %v638 = vunpack.c.l.b16 %v342
    %v639 = vunpack.c.h.b16 %v342
    %v640 = vunpack.c.l.b16 %v343
    %v641 = vunpack.c.h.b16 %v343
    %v642 = vunpack.c.l.b16 %v344
    %v643 = vunpack.c.h.b16 %v344
    %v644 = vunpack.c.l.b16 %v345
    %v645 = vunpack.c.h.b16 %v345
    %v646 = vunpack.c.l.b16 %v346
    %v647 = vunpack.c.h.b16 %v346
    %v648 = vunpack.c.l.b16 %v347
    %v649 = vunpack.c.h.b16 %v347
    %v650 = vunpack.c.l.b16 %v348
    %v651 = vunpack.c.h.b16 %v348
    %v652 = vunpack.c.l.b16 %v349
    %v653 = vunpack.c.h.b16 %v349
    %v654 = vunpack.c.l.b16 %v350
    %v655 = vunpack.c.h.b16 %v350
    %v656 = vunpack.c.l.b16 %v351
    %v657 = vunpack.c.h.b16 %v351
    %v658 = vunpack.c.l.b16 %v352
    %v659 = vunpack.c.h.b16 %v352
    %v660 = vunpack.c.l.b16 %v353
    %v661 = vunpack.c.h.b16 %v353
    %v662 = vunpack.c.l.b16 %v354
    %v663 = vunpack.c.h.b16 %v354
    %v664 = vunpack.c.l.b16 %v355
    %v665 = vunpack.c.h.b16 %v355
    %v666 = vunpack.c.l.b16 %v356
    %v667 = vunpack.c.h.b16 %v356
    %v668 = vunpack.c.l.b16 %v357
    %v669 = vunpack.c.h.b16 %v357
    %v670 = vunpack.c.l.b16 %v358
    %v671 = vunpack.c.h.b16 %v358
    %v672 = vunpack.c.l.b16 %v359
    %v673 = vunpack.c.h.b16 %v359
    %v674 = vunpack.c.l.b16 %v360
    %v675 = vunpack.c.h.b16 %v360
    %v676 = vunpack.c.l.b16 %v361
    %v677 = vunpack.c.h.b16 %v361
    %v678 = vunpack.c.l.b16 %v362
    %v679 = vunpack.c.h.b16 %v362
    %v680 = vunpack.c.l.b16 %v363
    %v681 = vunpack.c.h.b16 %v363
    %v682 = vunpack.c.l.b16 %v364
    %v683 = vunpack.c.h.b16 %v364
    %v684 = vunpack.c.l.b16 %v365
    %v685 = vunpack.c.h.b16 %v365
    %v686 = vunpack.c.l.b16 %v366
    %v687 = vunpack.c.h.b16 %v366
    %v688 = vunpack.c.l.b16 %v367
    %v689 = vunpack.c.h.b16 %v367
    %v690 = vunpack.c.l.b16 %v368
    %v691 = vunpack.c.h.b16 %v368
    %v692 = vunpack.c.l.b16 %v369
    %v693 = vunpack.c.h.b16 %v369
    %v694 = vunpack.c.l.b16 %v370
    %v695 = vunpack.c.h.b16 %v370
    %v696 = vunpack.c.l.b16 %v371
    %v697 = vunpack.c.h.b16 %v371
    %v698 = vunpack.c.l.b16 %v372
    %v699 = vunpack.c.h.b16 %v372
    %v700 = vunpack.c.l.b16 %v373
    %v701 = vunpack.c.h.b16 %v373
    %v702 = vunpack.c.l.b16 %v374
    %v703 = vunpack.c.h.b16 %v374
    %v704 = vunpack.c.l.b16 %v375
    %v705 = vunpack.c.h.b16 %v375
    %v706 = vunpack.c.l.b16 %v376
    %v707 = vunpack.c.h.b16 %v376
    %v708 = vunpack.c.l.b16 %v377
    %v709 = vunpack.c.h.b16 %v377
    %v710 = vunpack.c.l.b16 %v378
    %v711 = vunpack.c.h.b16 %v378
    %v712 = vunpack.c.l.b16 %v379
    %v713 = vunpack.c.h.b16 %v379
    %v714 = vunpack.c.l.b16 %v380
    %v715 = vunpack.c.h.b16 %v380
    %v716 = vunpack.c.l.b16 %v381
    %v717 = vunpack.c.h.b16 %v381
    %v718 = vunpack.c.l.b16 %v382
    %v719 = vunpack.c.h.b16 %v382
    %v720 = vunpack.c.l.b16 %v383
    %v721 = vunpack.c.h.b16 %v383
    %v722 = vunpack.c.l.b16 %v384
    %v723 = vunpack.c.h.b16 %v384
    %v724 = vunpack.c.l.b16 %v385
    %v725 = vunpack.c.h.b16 %v385
    %v726 = vunpack.c.l.b16 %v386
    %v727 = vunpack.c.h.b16 %v386
    %v728 = vunpack.c.l.b16 %v387
    %v729 = vunpack.c.h.b16 %v387
    %v730 = vunpack.c.l.b16 %v388
    %v731 = vunpack.c.h.b16 %v388
    %v732 = vunpack.c.l.b16 %v389
    %v733 = vunpack.c.h.b16 %v389
    %v734 = vunpack.c.l.b16 %v390
    %v735 = vunpack.c.h.b16 %v390
    %v736 = vunpack.c.l.b16 %v391
    %v737 = vunpack.c.h.b16 %v391
    %v738 = vunpack.c.l.b16 %v392
    %v739 = vunpack.c.h.b16 %v392
    %v740 = vunpack.c.l.b16 %v393
    %v741 = vunpack.c.h.b16 %v393
    %v742 = vunpack.c.l.b16 %v394
    %v743 = vunpack.c.h.b16 %v394
    %v744 = vunpack.c.l.b16 %v395
    %v745 = vunpack.c.h.b16 %v395
    %v746 = vunpack.c.l.b16 %v396
    %v747 = vunpack.c.h.b16 %v396
    %v748 = vunpack.c.l.b16 %v397
    %v749 = vunpack.c.h.b16 %v397
    %v750 = vunpack.c.l.b16 %v398
    %v751 = vunpack.c.h.b16 %v398
    %v752 = vunpack.c.l.b16 %v399
    %v753 = vunpack.c.h.b16 %v399
    %v754 = vunpack.c.l.b16 %v400
    %v755 = vunpack.c.h.b16 %v400
    %v756 = vunpack.c.l.b16 %v401
    %v757 = vunpack.c.h.b16 %v401
    %v758 = vunpack.c.l.b16 %v402
    %v759 = vunpack.c.h.b16 %v402
    %v760 = vunpack.c.l.b16 %v403
    %v761 = vunpack.c.h.b16 %v403
    %v762 = vunpack.c.l.b16 %v404
    %v763 = vunpack.c.h.b16 %v404
    %v764 = vunpack.c.l.b16 %v405
    %v765 = vunpack.c.h.b16 %v405
    %v766 = vunpack.c.l.b16 %v406
    %v767 = vunpack.c.h.b16 %v406
    %v768 = vunpack.c.l.b16 %v407
    %v769 = vunpack.c.h.b16 %v407
    %v770 = vunpack.c.l.b16 %v408
    %v771 = vunpack.c.h.b16 %v408
    %v772 = vunpack.c.l.b16 %v409
    %v773 = vunpack.c.h.b16 %v409
    %v774 = vunpack.c.l.b16 %v410
    %v775 = vunpack.c.h.b16 %v410
    %v776 = vunpack.c.l.b16 %v411
    %v777 = vunpack.c.h.b16 %v411
    %v778 = vunpack.c.l.b16 %v412
    %v779 = vunpack.c.h.b16 %v412
    %v780 = vunpack.c.l.b16 %v413
    %v781 = vunpack.c.h.b16 %v413
    %v782 = vunpack.c.l.b16 %v414
    %v783 = vunpack.c.h.b16 %v414
    %v784 = vunpack.c.l.b16 %v415
    %v785 = vunpack.c.h.b16 %v415
    %v786 = vunpack.c.l.b16 %v416
    %v787 = vunpack.c.h.b16 %v416
    %v788 = vunpack.c.l.b16 %v417
    %v789 = vunpack.c.h.b16 %v417
    %v790 = vunpack.c.l.b16 %v418
    %v791 = vunpack.c.h.b16 %v418
    %v792 = vunpack.c.l.b16 %v419
    %v793 = vunpack.c.h.b16 %v419
    %v794 = vunpack.c.l.b16 %v420
    %v795 = vunpack.c.h.b16 %v420
    %v796 = vunpack.c.l.b16 %v421
    %v797 = vunpack.c.h.b16 %v421
    %v798 = vunpack.c.l.b16 %v422
    %v799 = vunpack.c.h.b16 %v422
    %v800 = vunpack.c.l.b16 %v423
    %v801 = vunpack.c.h.b16 %v423
    %v802 = vunpack.c.l.b16 %v424
    %v803 = vunpack.c.h.b16 %v424
    %v804 = vunpack.c.l.b16 %v425
    %v805 = vunpack.c.h.b16 %v425
    %v806 = vunpack.c.l.b16 %v426
    %v807 = vunpack.c.h.b16 %v426
    %v808 = vunpack.c.l.b16 %v427
    %v809 = vunpack.c.h.b16 %v427
    %v810 = vunpack.c.l.b16 %v428
    %v811 = vunpack.c.h.b16 %v428
    %v812 = vunpack.c.l.b16 %v429
    %v813 = vunpack.c.h.b16 %v429
    %v814 = vpack.c.b16 %v560, %v558
    %v815 = vpack.c.b16 %v561, %v559
    %v816 = vpack.c.b16 %v564, %v562
    %v817 = vpack.c.b16 %v565, %v563
    %v818 = vpack.c.b16 %v568, %v566
    %v819 = vpack.c.b16 %v569, %v567
    %v820 = vpack.c.b16 %v572, %v570
    %v821 = vpack.c.b16 %v573, %v571
    %v822 = vpack.c.b16 %v576, %v574
    %v823 = vpack.c.b16 %v577, %v575
    %v824 = vpack.c.b16 %v580, %v578
    %v825 = vpack.c.b16 %v581, %v579
    %v826 = vpack.c.b16 %v584, %v582
    %v827 = vpack.c.b16 %v585, %v583
    %v828 = vpack.c.b16 %v588, %v586
    %v829 = vpack.c.b16 %v589, %v587
    %v830 = vpack.c.b16 %v592, %v590
    %v831 = vpack.c.b16 %v593, %v591
    %v832 = vpack.c.b16 %v596, %v594
    %v833 = vpack.c.b16 %v597, %v595
    %v834 = vpack.c.b16 %v600, %v598
    %v835 = vpack.c.b16 %v601, %v599
    %v836 = vpack.c.b16 %v604, %v602
    %v837 = vpack.c.b16 %v605, %v603
    %v838 = vpack.c.b16 %v608, %v606
    %v839 = vpack.c.b16 %v609, %v607
    %v840 = vpack.c.b16 %v612, %v610
    %v841 = vpack.c.b16 %v613, %v611
    %v842 = vpack.c.b16 %v616, %v614
    %v843 = vpack.c.b16 %v617, %v615
    %v844 = vpack.c.b16 %v620, %v618
    %v845 = vpack.c.b16 %v621, %v619
    %v846 = vpack.c.b16 %v624, %v622
    %v847 = vpack.c.b16 %v625, %v623
    %v848 = vpack.c.b16 %v628, %v626
    %v849 = vpack.c.b16 %v629, %v627
    %v850 = vpack.c.b16 %v632, %v630
    %v851 = vpack.c.b16 %v633, %v631
    %v852 = vpack.c.b16 %v636, %v634
    %v853 = vpack.c.b16 %v637, %v635
    %v854 = vpack.c.b16 %v640, %v638
    %v855 = vpack.c.b16 %v641, %v639
    %v856 = vpack.c.b16 %v644, %v642
    %v857 = vpack.c.b16 %v645, %v643
    %v858 = vpack.c.b16 %v648, %v646
    %v859 = vpack.c.b16 %v649, %v647
    %v860 = vpack.c.b16 %v652, %v650
    %v861 = vpack.c.b16 %v653, %v651
    %v862 = vpack.c.b16 %v656, %v654
    %v863 = vpack.c.b16 %v657, %v655
    %v864 = vpack.c.b16 %v660, %v658
    %v865 = vpack.c.b16 %v661, %v659
    %v866 = vpack.c.b16 %v664, %v662
    %v867 = vpack.c.b16 %v665, %v663
    %v868 = vpack.c.b16 %v668, %v666
    %v869 = vpack.c.b16 %v669, %v667
    %v870 = vpack.c.b16 %v672, %v670
    %v871 = vpack.c.b16 %v673, %v671
    %v872 = vpack.c.b16 %v676, %v674
    %v873 = vpack.c.b16 %v677, %v675
    %v874 = vpack.c.b16 %v680, %v678
    %v875 = vpack.c.b16 %v681, %v679
    %v876 = vpack.c.b16 %v684, %v682
    %v877 = vpack.c.b16 %v685, %v683
    %v878 = vpack.c.b16 %v688, %v686
    %v879 = vpack.c.b16 %v689, %v687
    %v880 = vpack.c.b16 %v692, %v690
    %v881 = vpack.c.b16 %v693, %v691
    %v882 = vpack.c.b16 %v696, %v694
    %v883 = vpack.c.b16 %v697, %v695
    %v884 = vpack.c.b16 %v700, %v698
    %v885 = vpack.c.b16 %v701, %v699
    %v886 = vpack.c.b16 %v704, %v702
    %v887 = vpack.c.b16 %v705, %v703
    %v888 = vpack.c.b16 %v708, %v706
    %v889 = vpack.c.b16 %v709, %v707
    %v890 = vpack.c.b16 %v712, %v710
    %v891 = vpack.c.b16 %v713, %v711
    %v892 = vpack.c.b16 %v716, %v714
    %v893 = vpack.c.b16 %v717, %v715
    %v894 = vpack.c.b16 %v720, %v718
    %v895 = vpack.c.b16 %v721, %v719
    %v896 = vpack.c.b16 %v724, %v722
    %v897 = vpack.c.b16 %v725, %v723
    %v898 = vpack.c.b16 %v728, %v726
    %v899 = vpack.c.b16 %v729, %v727
    %v900 = vpack.c.b16 %v732, %v730
    %v901 = vpack.c.b16 %v733, %v731
    %v902 = vpack.c.b16 %v736, %v734
    %v903 = vpack.c.b16 %v737, %v735
    %v904 = vpack.c.b16 %v740, %v738
    %v905 = vpack.c.b16 %v741, %v739
    %v906 = vpack.c.b16 %v744, %v742
    %v907 = vpack.c.b16 %v745, %v743
    %v908 = vpack.c.b16 %v748, %v746
    %v909 = vpack.c.b16 %v749, %v747
    %v910 = vpack.c.b16 %v752, %v750
    %v911 = vpack.c.b16 %v753, %v751
    %v912 = vpack.c.b16 %v756, %v754
    %v913 = vpack.c.b16 %v757, %v755
    %v914 = vpack.c.b16 %v760, %v758
    %v915 = vpack.c.b16 %v761, %v759
    %v916 = vpack.c.b16 %v764, %v762
    %v917 = vpack.c.b16 %v765, %v763
    %v918 = vpack.c.b16 %v768, %v766
    %v919 = vpack.c.b16 %v769, %v767
    %v920 = vpack.c.b16 %v772, %v770
    %v921 = vpack.c.b16 %v773, %v771
    %v922 = vpack.c.b16 %v776, %v774
    %v923 = vpack.c.b16 %v777, %v775
    %v924 = vpack.c.b16 %v780, %v778
    %v925 = vpack.c.b16 %v781, %v779
    %v926 = vpack.c.b16 %v784, %v782
    %v927 = vpack.c.b16 %v785, %v783
    %v928 = vpack.c.b16 %v788, %v786
    %v929 = vpack.c.b16 %v789, %v787
    %v930 = vpack.c.b16 %v792, %v790
    %v931 = vpack.c.b16 %v793, %v791
    %v932 = vpack.c.b16 %v796, %v794
    %v933 = vpack.c.b16 %v797, %v795
    %v934 = vpack.c.b16 %v800, %v798
    %v935 = vpack.c.b16 %v801, %v799
    %v936 = vpack.c.b16 %v804, %v802
    %v937 = vpack.c.b16 %v805, %v803
    %v938 = vpack.c.b16 %v808, %v806
    %v939 = vpack.c.b16 %v809, %v807
    %v940 = vpack.c.b16 %v812, %v810
    %v941 = vpack.c.b16 %v813, %v811
    %1070 = vmatprep.subr.bf16.mxu0 %v829
    %1071 = vmatpush1.bf16.msra.mxu0 %v828
    %1072 = vmatprep.subr.bf16.mxu0 %v827
    %1073 = vmatpush1.bf16.msra.mxu0 %v826
    %1074 = vmatprep.subr.bf16.mxu0 %v825
    %1075 = vmatpush1.bf16.msra.mxu0 %v824
    %1076 = vmatprep.subr.bf16.mxu0 %v823
    %1077 = vmatpush1.bf16.msra.mxu0 %v822
    %1078 = vmatprep.subr.bf16.mxu0 %v821
    %1079 = vmatpush1.bf16.msra.mxu0 %v820
    %1080 = vmatprep.subr.bf16.mxu0 %v819
    %1081 = vmatpush1.bf16.msra.mxu0 %v818
    %1082 = vmatprep.subr.bf16.mxu0 %v817
    %1083 = vmatpush1.bf16.msra.mxu0 %v816
    %1084 = vmatprep.subr.bf16.mxu0 %v815
    %1085 = vmatpush1.bf16.msra.mxu0 %v814
    %1086 = vmatprep.subr.bf16.mxu0 %v845
    %1087 = vmatpush2.bf16.msra.mxu0 %v844
    %1088 = vmatprep.subr.bf16.mxu0 %v843
    %1089 = vmatpush2.bf16.msra.mxu0 %v842
    %1090 = vmatprep.subr.bf16.mxu0 %v841
    %1091 = vmatpush2.bf16.msra.mxu0 %v840
    %1092 = vmatprep.subr.bf16.mxu0 %v839
    %1093 = vmatpush2.bf16.msra.mxu0 %v838
    %1094 = vmatprep.subr.bf16.mxu0 %v837
    %1095 = vmatpush2.bf16.msra.mxu0 %v836
    %1096 = vmatprep.subr.bf16.mxu0 %v835
    %1097 = vmatpush2.bf16.msra.mxu0 %v834
    %1098 = vmatprep.subr.bf16.mxu0 %v833
    %1099 = vmatpush2.bf16.msra.mxu0 %v832
    %1100 = vmatprep.subr.bf16.mxu0 %v831
    %1101 = vmatpush2.bf16.msra.mxu0 %v830
    %1102 = vmatprep.mubr.bf16.mxu0 %v295
    %1103 = vmatmul.mubr.bf16.gmra.mxu0 %v294
    %v1104 = vpop.f32.mrf.mxu0
    %v1105 = vadd.f32 0.0, %v1104
    %v1106 = vpop.f32.mrf.mxu0
    %v1107 = vadd.f32 0.0, %v1106
    %v1108 = vpop.f32.mrf.mxu0
    %v1109 = vadd.f32 0.0, %v1108
    %v1110 = vpop.f32.mrf.mxu0
    %v1111 = vadd.f32 0.0, %v1110
    %1112 = vdwg.mxu0
    %1113 = vmatprep.subr.bf16.mxu0 %v861
    %1114 = vmatpush1.bf16.msra.mxu0 %v860
    %1115 = vmatprep.subr.bf16.mxu0 %v859
    %1116 = vmatpush1.bf16.msra.mxu0 %v858
    %1117 = vmatprep.subr.bf16.mxu0 %v857
    %1118 = vmatpush1.bf16.msra.mxu0 %v856
    %1119 = vmatprep.subr.bf16.mxu0 %v855
    %1120 = vmatpush1.bf16.msra.mxu0 %v854
    %1121 = vmatprep.subr.bf16.mxu0 %v853
    %1122 = vmatpush1.bf16.msra.mxu0 %v852
    %1123 = vmatprep.subr.bf16.mxu0 %v851
    %1124 = vmatpush1.bf16.msra.mxu0 %v850
    %1125 = vmatprep.subr.bf16.mxu0 %v849
    %1126 = vmatpush1.bf16.msra.mxu0 %v848
    %1127 = vmatprep.subr.bf16.mxu0 %v847
    %1128 = vmatpush1.bf16.msra.mxu0 %v846
    %1129 = vmatprep.subr.bf16.mxu0 %v877
    %1130 = vmatpush2.bf16.msra.mxu0 %v876
    %1131 = vmatprep.subr.bf16.mxu0 %v875
    %1132 = vmatpush2.bf16.msra.mxu0 %v874
    %1133 = vmatprep.subr.bf16.mxu0 %v873
    %1134 = vmatpush2.bf16.msra.mxu0 %v872
    %1135 = vmatprep.subr.bf16.mxu0 %v871
    %1136 = vmatpush2.bf16.msra.mxu0 %v870
    %1137 = vmatprep.subr.bf16.mxu0 %v869
    %1138 = vmatpush2.bf16.msra.mxu0 %v868
    %1139 = vmatprep.subr.bf16.mxu0 %v867
    %1140 = vmatpush2.bf16.msra.mxu0 %v866
    %1141 = vmatprep.subr.bf16.mxu0 %v865
    %1142 = vmatpush2.bf16.msra.mxu0 %v864
    %1143 = vmatprep.subr.bf16.mxu0 %v863
    %1144 = vmatpush2.bf16.msra.mxu0 %v862
    %1145 = vmatprep.mubr.bf16.mxu0 %v297
    %1146 = vmatmul.mubr.bf16.gmra.mxu0 %v296
    %v1147 = vpop.f32.mrf.mxu0
    %v1148 = vadd.f32 %v1105, %v1147
    %v1149 = vpop.f32.mrf.mxu0
    %v1150 = vadd.f32 %v1107, %v1149
    %v1151 = vpop.f32.mrf.mxu0
    %v1152 = vadd.f32 %v1109, %v1151
    %v1153 = vpop.f32.mrf.mxu0
    %v1154 = vadd.f32 %v1111, %v1153
    %1155 = vdwg.mxu0
    %1156 = vmatprep.subr.bf16.mxu0 %v893
    %1157 = vmatpush1.bf16.msra.mxu0 %v892
    %1158 = vmatprep.subr.bf16.mxu0 %v891
    %1159 = vmatpush1.bf16.msra.mxu0 %v890
    %1160 = vmatprep.subr.bf16.mxu0 %v889
    %1161 = vmatpush1.bf16.msra.mxu0 %v888
    %1162 = vmatprep.subr.bf16.mxu0 %v887
    %1163 = vmatpush1.bf16.msra.mxu0 %v886
    %1164 = vmatprep.subr.bf16.mxu0 %v885
    %1165 = vmatpush1.bf16.msra.mxu0 %v884
    %1166 = vmatprep.subr.bf16.mxu0 %v883
    %1167 = vmatpush1.bf16.msra.mxu0 %v882
    %1168 = vmatprep.subr.bf16.mxu0 %v881
    %1169 = vmatpush1.bf16.msra.mxu0 %v880
    %1170 = vmatprep.subr.bf16.mxu0 %v879
    %1171 = vmatpush1.bf16.msra.mxu0 %v878
    %1172 = vmatprep.subr.bf16.mxu0 %v909
    %1173 = vmatpush2.bf16.msra.mxu0 %v908
    %1174 = vmatprep.subr.bf16.mxu0 %v907
    %1175 = vmatpush2.bf16.msra.mxu0 %v906
    %1176 = vmatprep.subr.bf16.mxu0 %v905
    %1177 = vmatpush2.bf16.msra.mxu0 %v904
    %1178 = vmatprep.subr.bf16.mxu0 %v903
    %1179 = vmatpush2.bf16.msra.mxu0 %v902
    %1180 = vmatprep.subr.bf16.mxu0 %v901
    %1181 = vmatpush2.bf16.msra.mxu0 %v900
    %1182 = vmatprep.subr.bf16.mxu0 %v899
    %1183 = vmatpush2.bf16.msra.mxu0 %v898
    %1184 = vmatprep.subr.bf16.mxu0 %v897
    %1185 = vmatpush2.bf16.msra.mxu0 %v896
    %1186 = vmatprep.subr.bf16.mxu0 %v895
    %1187 = vmatpush2.bf16.msra.mxu0 %v894
    %1188 = vmatprep.mubr.bf16.mxu0 %v299
    %1189 = vmatmul.mubr.bf16.gmra.mxu0 %v298
    %v1190 = vpop.f32.mrf.mxu0
    %v1191 = vadd.f32 %v1148, %v1190
    %v1192 = vpop.f32.mrf.mxu0
    %v1193 = vadd.f32 %v1150, %v1192
    %v1194 = vpop.f32.mrf.mxu0
    %v1195 = vadd.f32 %v1152, %v1194
    %v1196 = vpop.f32.mrf.mxu0
    %v1197 = vadd.f32 %v1154, %v1196
    %1198 = vdwg.mxu0
    %1199 = vmatprep.subr.bf16.mxu0 %v925
    %1200 = vmatpush1.bf16.msra.mxu0 %v924
    %1201 = vmatprep.subr.bf16.mxu0 %v923
    %1202 = vmatpush1.bf16.msra.mxu0 %v922
    %1203 = vmatprep.subr.bf16.mxu0 %v921
    %1204 = vmatpush1.bf16.msra.mxu0 %v920
    %1205 = vmatprep.subr.bf16.mxu0 %v919
    %1206 = vmatpush1.bf16.msra.mxu0 %v918
    %1207 = vmatprep.subr.bf16.mxu0 %v917
    %1208 = vmatpush1.bf16.msra.mxu0 %v916
    %1209 = vmatprep.subr.bf16.mxu0 %v915
    %1210 = vmatpush1.bf16.msra.mxu0 %v914
    %1211 = vmatprep.subr.bf16.mxu0 %v913
    %1212 = vmatpush1.bf16.msra.mxu0 %v912
    %1213 = vmatprep.subr.bf16.mxu0 %v911
    %1214 = vmatpush1.bf16.msra.mxu0 %v910
    %1215 = vmatprep.subr.bf16.mxu0 %v941
    %1216 = vmatpush2.bf16.msra.mxu0 %v940
    %1217 = vmatprep.subr.bf16.mxu0 %v939
    %1218 = vmatpush2.bf16.msra.mxu0 %v938
    %1219 = vmatprep.subr.bf16.mxu0 %v937
    %1220 = vmatpush2.bf16.msra.mxu0 %v936
    %1221 = vmatprep.subr.bf16.mxu0 %v935
    %1222 = vmatpush2.bf16.msra.mxu0 %v934
    %1223 = vmatprep.subr.bf16.mxu0 %v933
    %1224 = vmatpush2.bf16.msra.mxu0 %v932
    %1225 = vmatprep.subr.bf16.mxu0 %v931
    %1226 = vmatpush2.bf16.msra.mxu0 %v930
    %1227 = vmatprep.subr.bf16.mxu0 %v929
    %1228 = vmatpush2.bf16.msra.mxu0 %v928
    %1229 = vmatprep.subr.bf16.mxu0 %v927
    %1230 = vmatpush2.bf16.msra.mxu0 %v926
    %1231 = vmatprep.mubr.bf16.mxu0 %v301
    %1232 = vmatmul.mubr.bf16.gmra.mxu0 %v300
    %v1233 = vpop.f32.mrf.mxu0
    %v1234 = vadd.f32 %v1191, %v1233
    %v1235 = vpop.f32.mrf.mxu0
    %v1236 = vadd.f32 %v1193, %v1235
    %v1237 = vpop.f32.mrf.mxu0
    %v1238 = vadd.f32 %v1195, %v1237
    %v1239 = vpop.f32.mrf.mxu0
    %v1240 = vadd.f32 %v1197, %v1239
    %1241 = vdwg.mxu0
    %v1242 = vpack.c.bf16 %v1238, %v1234
    %v1243 = vpack.c.bf16 %v1240, %v1236
    %v1244 = vld [vmem:[%s2] sm:$0x3]
    %v1247 = vunpack.c.l.s4 1966171168
    %v1248 = vunpack.c.0.s8 %v1247
    %v1249 = vlaneseq
    %v1250 = vshrl.u32 %v1249, 7
    %v1251 = vsub.s32 %v1248, %v1250
    %v1252 = vrot.slane %v1244, %v1251
    %v1253 = vcombine.high %v1252, %v1252
    %v1255 = vunpack.c.l.s4 1966171168
    %v1256 = vunpack.c.0.s8 %v1255
    %v1257 = vlaneseq
    %v1258 = vshrl.u32 %v1257, 7
    %v1259 = vsub.s32 %v1256, %v1258
    %v1260 = vrot.slane %v1252, %v1259
    %v1262 = vunpack.c.l.s4 1966171168
    %v1263 = vunpack.c.0.s8 %v1262
    %v1264 = vlaneseq
    %v1265 = vshrl.u32 %v1264, 7
    %v1266 = vsub.s32 %v1263, %v1265
    %v1267 = vrot.slane %v1253, %v1266
    %v1269 = vpack.i.b16 %v1260, %v1260
    %v1271 = vlaneseq
    %v1272 = vshrl.u32 %v1271, 7
    %v1273 = vsub.s32 0, %v1272
    %v1274 = vrot.slane %v1269, %v1273
    %v1276 = vpack.i.b16 %v1267, %v1267
    %v1278 = vlaneseq
    %v1279 = vshrl.u32 %v1278, 7
    %v1280 = vsub.s32 0, %v1279
    %v1281 = vrot.slane %v1276, %v1280
    %v1282 = vadd.bf16 %v1242, %v1274
    %v1283 = vadd.bf16 %v1243, %v1281
    %v1284 = vmax.bf16 %v1282, 0
    %v1285 = vmax.bf16 %v1283, 0
    %v1286 = vld [vmem:[#allocation7] sm:$0xff]
    %v1287 = vld [vmem:[#allocation7 + $0x8] sm:$0xff]
    %v1288 = vld [vmem:[#allocation7 + $0x10] sm:$0xff]
    %v1289 = vld [vmem:[#allocation7 + $0x18] sm:$0xff]
    %v1290 = vld [vmem:[#allocation7 + $0x20] sm:$0xff]
    %v1291 = vld [vmem:[#allocation7 + $0x28] sm:$0xff]
    %v1292 = vld [vmem:[#allocation7 + $0x30] sm:$0xff]
    %v1293 = vld [vmem:[#allocation7 + $0x38] sm:$0xff]
    %v1294 = vld [vmem:[#allocation7 + $0x40] sm:$0xff]
    %v1295 = vld [vmem:[#allocation7 + $0x48] sm:$0xff]
    %v1296 = vld [vmem:[#allocation7 + $0x50] sm:$0xff]
    %v1297 = vld [vmem:[#allocation7 + $0x58] sm:$0xff]
    %v1298 = vld [vmem:[#allocation7 + $0x60] sm:$0xff]
    %v1299 = vld [vmem:[#allocation7 + $0x68] sm:$0xff]
    %v1300 = vld [vmem:[#allocation7 + $0x70] sm:$0xff]
    %v1301 = vld [vmem:[#allocation7 + $0x78] sm:$0xff]
    %v1302 = vld [vmem:[#allocation7 + $0x80] sm:$0xff]
    %v1303 = vld [vmem:[#allocation7 + $0x88] sm:$0xff]
    %v1304 = vld [vmem:[#allocation7 + $0x90] sm:$0xff]
    %v1305 = vld [vmem:[#allocation7 + $0x98] sm:$0xff]
    %v1306 = vld [vmem:[#allocation7 + $0xa0] sm:$0xff]
    %v1307 = vld [vmem:[#allocation7 + $0xa8] sm:$0xff]
    %v1308 = vld [vmem:[#allocation7 + $0xb0] sm:$0xff]
    %v1309 = vld [vmem:[#allocation7 + $0xb8] sm:$0xff]
    %v1310 = vld [vmem:[#allocation7 + $0xc0] sm:$0xff]
    %v1311 = vld [vmem:[#allocation7 + $0xc8] sm:$0xff]
    %v1312 = vld [vmem:[#allocation7 + $0xd0] sm:$0xff]
    %v1313 = vld [vmem:[#allocation7 + $0xd8] sm:$0xff]
    %v1314 = vld [vmem:[#allocation7 + $0xe0] sm:$0xff]
    %v1315 = vld [vmem:[#allocation7 + $0xe8] sm:$0xff]
    %v1316 = vld [vmem:[#allocation7 + $0xf0] sm:$0xff]
    %v1317 = vld [vmem:[#allocation7 + $0xf8] sm:$0xff]
    %v1350 = vunpack.c.l.b16 %v1286
    %v1351 = vunpack.c.h.b16 %v1286
    %v1352 = vunpack.c.l.b16 %v1287
    %v1353 = vunpack.c.h.b16 %v1287
    %v1354 = vunpack.c.l.b16 %v1288
    %v1355 = vunpack.c.h.b16 %v1288
    %v1356 = vunpack.c.l.b16 %v1289
    %v1357 = vunpack.c.h.b16 %v1289
    %v1358 = vunpack.c.l.b16 %v1290
    %v1359 = vunpack.c.h.b16 %v1290
    %v1360 = vunpack.c.l.b16 %v1291
    %v1361 = vunpack.c.h.b16 %v1291
    %v1362 = vunpack.c.l.b16 %v1292
    %v1363 = vunpack.c.h.b16 %v1292
    %v1364 = vunpack.c.l.b16 %v1293
    %v1365 = vunpack.c.h.b16 %v1293
    %v1366 = vunpack.c.l.b16 %v1294
    %v1367 = vunpack.c.h.b16 %v1294
    %v1368 = vunpack.c.l.b16 %v1295
    %v1369 = vunpack.c.h.b16 %v1295
    %v1370 = vunpack.c.l.b16 %v1296
    %v1371 = vunpack.c.h.b16 %v1296
    %v1372 = vunpack.c.l.b16 %v1297
    %v1373 = vunpack.c.h.b16 %v1297
    %v1374 = vunpack.c.l.b16 %v1298
    %v1375 = vunpack.c.h.b16 %v1298
    %v1376 = vunpack.c.l.b16 %v1299
    %v1377 = vunpack.c.h.b16 %v1299
    %v1378 = vunpack.c.l.b16 %v1300
    %v1379 = vunpack.c.h.b16 %v1300
    %v1380 = vunpack.c.l.b16 %v1301
    %v1381 = vunpack.c.h.b16 %v1301
    %v1382 = vunpack.c.l.b16 %v1302
    %v1383 = vunpack.c.h.b16 %v1302
    %v1384 = vunpack.c.l.b16 %v1303
    %v1385 = vunpack.c.h.b16 %v1303
    %v1386 = vunpack.c.l.b16 %v1304
    %v1387 = vunpack.c.h.b16 %v1304
    %v1388 = vunpack.c.l.b16 %v1305
    %v1389 = vunpack.c.h.b16 %v1305
    %v1390 = vunpack.c.l.b16 %v1306
    %v1391 = vunpack.c.h.b16 %v1306
    %v1392 = vunpack.c.l.b16 %v1307
    %v1393 = vunpack.c.h.b16 %v1307
    %v1394 = vunpack.c.l.b16 %v1308
    %v1395 = vunpack.c.h.b16 %v1308
    %v1396 = vunpack.c.l.b16 %v1309
    %v1397 = vunpack.c.h.b16 %v1309
    %v1398 = vunpack.c.l.b16 %v1310
    %v1399 = vunpack.c.h.b16 %v1310
    %v1400 = vunpack.c.l.b16 %v1311
    %v1401 = vunpack.c.h.b16 %v1311
    %v1402 = vunpack.c.l.b16 %v1312
    %v1403 = vunpack.c.h.b16 %v1312
    %v1404 = vunpack.c.l.b16 %v1313
    %v1405 = vunpack.c.h.b16 %v1313
    %v1406 = vunpack.c.l.b16 %v1314
    %v1407 = vunpack.c.h.b16 %v1314
    %v1408 = vunpack.c.l.b16 %v1315
    %v1409 = vunpack.c.h.b16 %v1315
    %v1410 = vunpack.c.l.b16 %v1316
    %v1411 = vunpack.c.h.b16 %v1316
    %v1412 = vunpack.c.l.b16 %v1317
    %v1413 = vunpack.c.h.b16 %v1317
    %v1414 = vpack.c.b16 %v1352, %v1350
    %v1415 = vpack.c.b16 %v1353, %v1351
    %v1416 = vpack.c.b16 %v1356, %v1354
    %v1417 = vpack.c.b16 %v1357, %v1355
    %v1418 = vpack.c.b16 %v1360, %v1358
    %v1419 = vpack.c.b16 %v1361, %v1359
    %v1420 = vpack.c.b16 %v1364, %v1362
    %v1421 = vpack.c.b16 %v1365, %v1363
    %v1422 = vpack.c.b16 %v1368, %v1366
    %v1423 = vpack.c.b16 %v1369, %v1367
    %v1424 = vpack.c.b16 %v1372, %v1370
    %v1425 = vpack.c.b16 %v1373, %v1371
    %v1426 = vpack.c.b16 %v1376, %v1374
    %v1427 = vpack.c.b16 %v1377, %v1375
    %v1428 = vpack.c.b16 %v1380, %v1378
    %v1429 = vpack.c.b16 %v1381, %v1379
    %v1430 = vpack.c.b16 %v1384, %v1382
    %v1431 = vpack.c.b16 %v1385, %v1383
    %v1432 = vpack.c.b16 %v1388, %v1386
    %v1433 = vpack.c.b16 %v1389, %v1387
    %v1434 = vpack.c.b16 %v1392, %v1390
    %v1435 = vpack.c.b16 %v1393, %v1391
    %v1436 = vpack.c.b16 %v1396, %v1394
    %v1437 = vpack.c.b16 %v1397, %v1395
    %v1438 = vpack.c.b16 %v1400, %v1398
    %v1439 = vpack.c.b16 %v1401, %v1399
    %v1440 = vpack.c.b16 %v1404, %v1402
    %v1441 = vpack.c.b16 %v1405, %v1403
    %v1442 = vpack.c.b16 %v1408, %v1406
    %v1443 = vpack.c.b16 %v1409, %v1407
    %v1444 = vpack.c.b16 %v1412, %v1410
    %v1445 = vpack.c.b16 %v1413, %v1411
    %1478 = vmatprep.subr.bf16.mxu0 %v1429
    %1479 = vmatpush1.bf16.msra.mxu0 %v1428
    %1480 = vmatprep.subr.bf16.mxu0 %v1427
    %1481 = vmatpush1.bf16.msra.mxu0 %v1426
    %1482 = vmatprep.subr.bf16.mxu0 %v1425
    %1483 = vmatpush1.bf16.msra.mxu0 %v1424
    %1484 = vmatprep.subr.bf16.mxu0 %v1423
    %1485 = vmatpush1.bf16.msra.mxu0 %v1422
    %1486 = vmatprep.subr.bf16.mxu0 %v1421
    %1487 = vmatpush1.bf16.msra.mxu0 %v1420
    %1488 = vmatprep.subr.bf16.mxu0 %v1419
    %1489 = vmatpush1.bf16.msra.mxu0 %v1418
    %1490 = vmatprep.subr.bf16.mxu0 %v1417
    %1491 = vmatpush1.bf16.msra.mxu0 %v1416
    %1492 = vmatprep.subr.bf16.mxu0 %v1415
    %1493 = vmatpush1.bf16.msra.mxu0 %v1414
    %1494 = vmatprep.subr.bf16.mxu0 %v1445
    %1495 = vmatpush2.bf16.msra.mxu0 %v1444
    %1496 = vmatprep.subr.bf16.mxu0 %v1443
    %1497 = vmatpush2.bf16.msra.mxu0 %v1442
    %1498 = vmatprep.subr.bf16.mxu0 %v1441
    %1499 = vmatpush2.bf16.msra.mxu0 %v1440
    %1500 = vmatprep.subr.bf16.mxu0 %v1439
    %1501 = vmatpush2.bf16.msra.mxu0 %v1438
    %1502 = vmatprep.subr.bf16.mxu0 %v1437
    %1503 = vmatpush2.bf16.msra.mxu0 %v1436
    %1504 = vmatprep.subr.bf16.mxu0 %v1435
    %1505 = vmatpush2.bf16.msra.mxu0 %v1434
    %1506 = vmatprep.subr.bf16.mxu0 %v1433
    %1507 = vmatpush2.bf16.msra.mxu0 %v1432
    %1508 = vmatprep.subr.bf16.mxu0 %v1431
    %1509 = vmatpush2.bf16.msra.mxu0 %v1430
    %1510 = vmatprep.mubr.bf16.mxu0 %v1285
    %1511 = vmatmul.mubr.bf16.gmra.mxu0 %v1284
    %v1512 = vpop.f32.mrf.mxu0
    %v1513 = vadd.f32 0.0, %v1512
    %v1514 = vpop.f32.mrf.mxu0
    %v1515 = vadd.f32 0.0, %v1514
    %v1516 = vpop.f32.mrf.mxu0
    %v1517 = vadd.f32 0.0, %v1516
    %v1518 = vpop.f32.mrf.mxu0
    %v1519 = vadd.f32 0.0, %v1518
    %1520 = vdwg.mxu0
    %v1521 = vpack.c.bf16 %v1517, %v1513
    %v1522 = vpack.c.bf16 %v1519, %v1515
    %v1523 = vld [vmem:[%s4] sm:$0x3]
    %v1526 = vunpack.c.l.s4 1966171168
    %v1527 = vunpack.c.0.s8 %v1526
    %v1528 = vlaneseq
    %v1529 = vshrl.u32 %v1528, 7
    %v1530 = vsub.s32 %v1527, %v1529
    %v1531 = vrot.slane %v1523, %v1530
    %v1532 = vcombine.high %v1531, %v1531
    %v1534 = vunpack.c.l.s4 1966171168
    %v1535 = vunpack.c.0.s8 %v1534
    %v1536 = vlaneseq
    %v1537 = vshrl.u32 %v1536, 7
    %v1538 = vsub.s32 %v1535, %v1537
    %v1539 = vrot.slane %v1531, %v1538
    %v1541 = vunpack.c.l.s4 1966171168
    %v1542 = vunpack.c.0.s8 %v1541
    %v1543 = vlaneseq
    %v1544 = vshrl.u32 %v1543, 7
    %v1545 = vsub.s32 %v1542, %v1544
    %v1546 = vrot.slane %v1532, %v1545
    %v1548 = vpack.i.b16 %v1539, %v1539
    %v1550 = vlaneseq
    %v1551 = vshrl.u32 %v1550, 7
    %v1552 = vsub.s32 0, %v1551
    %v1553 = vrot.slane %v1548, %v1552
    %v1555 = vpack.i.b16 %v1546, %v1546
    %v1557 = vlaneseq
    %v1558 = vshrl.u32 %v1557, 7
    %v1559 = vsub.s32 0, %v1558
    %v1560 = vrot.slane %v1555, %v1559
    %v1561 = vadd.bf16 %v1521, %v1553
    %v1562 = vadd.bf16 %v1522, %v1560
    %v1563 = vmax.bf16 %v1561, 0
    %v1564 = vmax.bf16 %v1562, 0
    %v1565 = vld [vmem:[#allocation8] sm:$0xf]
    %v1566 = vld [vmem:[#allocation8 + $0x4] sm:$0xf]
    %v1567 = vld [vmem:[#allocation8 + $0x8] sm:$0xf]
    %v1568 = vld [vmem:[#allocation8 + $0xc] sm:$0xf]
    %v1569 = vld [vmem:[#allocation8 + $0x10] sm:$0xf]
    %v1570 = vld [vmem:[#allocation8 + $0x14] sm:$0xf]
    %v1571 = vld [vmem:[#allocation8 + $0x18] sm:$0xf]
    %v1572 = vld [vmem:[#allocation8 + $0x1c] sm:$0xf]
    %v1573 = vld [vmem:[#allocation8 + $0x20] sm:$0xf]
    %v1574 = vld [vmem:[#allocation8 + $0x24] sm:$0xf]
    %v1575 = vld [vmem:[#allocation8 + $0x28] sm:$0xf]
    %v1576 = vld [vmem:[#allocation8 + $0x2c] sm:$0xf]
    %v1577 = vld [vmem:[#allocation8 + $0x30] sm:$0xf]
    %v1578 = vld [vmem:[#allocation8 + $0x34] sm:$0xf]
    %v1579 = vld [vmem:[#allocation8 + $0x38] sm:$0xf]
    %v1580 = vld [vmem:[#allocation8 + $0x3c] sm:$0xf]
    %v1581 = vld [vmem:[#allocation8 + $0x40] sm:$0xf]
    %v1582 = vld [vmem:[#allocation8 + $0x44] sm:$0xf]
    %v1583 = vld [vmem:[#allocation8 + $0x48] sm:$0xf]
    %v1584 = vld [vmem:[#allocation8 + $0x4c] sm:$0xf]
    %v1585 = vld [vmem:[#allocation8 + $0x50] sm:$0xf]
    %v1586 = vld [vmem:[#allocation8 + $0x54] sm:$0xf]
    %v1587 = vld [vmem:[#allocation8 + $0x58] sm:$0xf]
    %v1588 = vld [vmem:[#allocation8 + $0x5c] sm:$0xf]
    %v1589 = vld [vmem:[#allocation8 + $0x60] sm:$0xf]
    %v1590 = vld [vmem:[#allocation8 + $0x64] sm:$0xf]
    %v1591 = vld [vmem:[#allocation8 + $0x68] sm:$0xf]
    %v1592 = vld [vmem:[#allocation8 + $0x6c] sm:$0xf]
    %v1593 = vld [vmem:[#allocation8 + $0x70] sm:$0xf]
    %v1594 = vld [vmem:[#allocation8 + $0x74] sm:$0xf]
    %v1595 = vld [vmem:[#allocation8 + $0x78] sm:$0xf]
    %v1596 = vld [vmem:[#allocation8 + $0x7c] sm:$0xf]
    %v1629 = vunpack.c.l.b16 %v1565
    %v1630 = vunpack.c.l.b16 %v1566
    %v1631 = vunpack.c.l.b16 %v1567
    %v1632 = vunpack.c.l.b16 %v1568
    %v1633 = vunpack.c.l.b16 %v1569
    %v1634 = vunpack.c.l.b16 %v1570
    %v1635 = vunpack.c.l.b16 %v1571
    %v1636 = vunpack.c.l.b16 %v1572
    %v1637 = vunpack.c.l.b16 %v1573
    %v1638 = vunpack.c.l.b16 %v1574
    %v1639 = vunpack.c.l.b16 %v1575
    %v1640 = vunpack.c.l.b16 %v1576
    %v1641 = vunpack.c.l.b16 %v1577
    %v1642 = vunpack.c.l.b16 %v1578
    %v1643 = vunpack.c.l.b16 %v1579
    %v1644 = vunpack.c.l.b16 %v1580
    %v1645 = vunpack.c.l.b16 %v1581
    %v1646 = vunpack.c.l.b16 %v1582
    %v1647 = vunpack.c.l.b16 %v1583
    %v1648 = vunpack.c.l.b16 %v1584
    %v1649 = vunpack.c.l.b16 %v1585
    %v1650 = vunpack.c.l.b16 %v1586
    %v1651 = vunpack.c.l.b16 %v1587
    %v1652 = vunpack.c.l.b16 %v1588
    %v1653 = vunpack.c.l.b16 %v1589
    %v1654 = vunpack.c.l.b16 %v1590
    %v1655 = vunpack.c.l.b16 %v1591
    %v1656 = vunpack.c.l.b16 %v1592
    %v1657 = vunpack.c.l.b16 %v1593
    %v1658 = vunpack.c.l.b16 %v1594
    %v1659 = vunpack.c.l.b16 %v1595
    %v1660 = vunpack.c.l.b16 %v1596
    %v1661 = vpack.c.b16 %v1630, %v1629
    %v1662 = vpack.c.b16 %v1632, %v1631
    %v1663 = vpack.c.b16 %v1634, %v1633
    %v1664 = vpack.c.b16 %v1636, %v1635
    %v1665 = vpack.c.b16 %v1638, %v1637
    %v1666 = vpack.c.b16 %v1640, %v1639
    %v1667 = vpack.c.b16 %v1642, %v1641
    %v1668 = vpack.c.b16 %v1644, %v1643
    %v1669 = vpack.c.b16 %v1646, %v1645
    %v1670 = vpack.c.b16 %v1648, %v1647
    %v1671 = vpack.c.b16 %v1650, %v1649
    %v1672 = vpack.c.b16 %v1652, %v1651
    %v1673 = vpack.c.b16 %v1654, %v1653
    %v1674 = vpack.c.b16 %v1656, %v1655
    %v1675 = vpack.c.b16 %v1658, %v1657
    %v1676 = vpack.c.b16 %v1660, %v1659
    %1693 = vmatprep.subr.bf16.mxu0 0
    %1694 = vmatpush1.bf16.msra.mxu0 %v1668
    %1695 = vmatprep.subr.bf16.mxu0 0
    %1696 = vmatpush1.bf16.msra.mxu0 %v1667
    %1697 = vmatprep.subr.bf16.mxu0 0
    %1698 = vmatpush1.bf16.msra.mxu0 %v1666
    %1699 = vmatprep.subr.bf16.mxu0 0
    %1700 = vmatpush1.bf16.msra.mxu0 %v1665
    %1701 = vmatprep.subr.bf16.mxu0 0
    %1702 = vmatpush1.bf16.msra.mxu0 %v1664
    %1703 = vmatprep.subr.bf16.mxu0 0
    %1704 = vmatpush1.bf16.msra.mxu0 %v1663
    %1705 = vmatprep.subr.bf16.mxu0 0
    %1706 = vmatpush1.bf16.msra.mxu0 %v1662
    %1707 = vmatprep.subr.bf16.mxu0 0
    %1708 = vmatpush1.bf16.msra.mxu0 %v1661
    %1709 = vmatprep.subr.bf16.mxu0 0
    %1710 = vmatpush2.bf16.msra.mxu0 %v1676
    %1711 = vmatprep.subr.bf16.mxu0 0
    %1712 = vmatpush2.bf16.msra.mxu0 %v1675
    %1713 = vmatprep.subr.bf16.mxu0 0
    %1714 = vmatpush2.bf16.msra.mxu0 %v1674
    %1715 = vmatprep.subr.bf16.mxu0 0
    %1716 = vmatpush2.bf16.msra.mxu0 %v1673
    %1717 = vmatprep.subr.bf16.mxu0 0
    %1718 = vmatpush2.bf16.msra.mxu0 %v1672
    %1719 = vmatprep.subr.bf16.mxu0 0
    %1720 = vmatpush2.bf16.msra.mxu0 %v1671
    %1721 = vmatprep.subr.bf16.mxu0 0
    %1722 = vmatpush2.bf16.msra.mxu0 %v1670
    %1723 = vmatprep.subr.bf16.mxu0 0
    %1724 = vmatpush2.bf16.msra.mxu0 %v1669
    %1725 = vmatprep.mubr.bf16.mxu0 %v1564
    %1726 = vmatmul.mubr.bf16.gmra.mxu0 %v1563
    %v1727 = vpop.f32.mrf.mxu0
    %v1728 = vadd.f32 0.0, %v1727
    %v1729 = vpop.f32.mrf.mxu0
    %v1730 = vpop.f32.mrf.mxu0
    %v1731 = vadd.f32 0.0, %v1730
    %v1732 = vpop.f32.mrf.mxu0
    %1733 = vdwg.mxu0
    %v1734 = vpack.c.bf16 %v1731, %v1728
    %v1735 = vld [vmem:[%s6] sm:$0x1]
    %v1737 = vpack.i.b16 %v1735, %v1735
    %v1739 = vlaneseq
    %v1740 = vshrl.u32 %v1739, 7
    %v1741 = vsub.s32 0, %v1740
    %v1742 = vrot.slane %v1737, %v1741
    %v1743 = vadd.bf16 %v1734, %v1742
    %v1744 = vmax.bf16 %v1743, 0
    %v1745 = vld [vmem:[#allocation10] sm:$0xf]
    %v1746 = vld [vmem:[#allocation10 + $0x4] sm:$0xf]
    %v1747 = vld [vmem:[#allocation10 + $0x8] sm:$0xf]
    %v1748 = vld [vmem:[#allocation10 + $0xc] sm:$0xf]
    %v1749 = vld [vmem:[#allocation10 + $0x10] sm:$0xf]
    %v1750 = vld [vmem:[#allocation10 + $0x14] sm:$0xf]
    %v1751 = vld [vmem:[#allocation10 + $0x18] sm:$0xf]
    %v1752 = vld [vmem:[#allocation10 + $0x1c] sm:$0xf]
    %v1753 = vld [vmem:[#allocation10 + $0x20] sm:$0xf]
    %v1754 = vld [vmem:[#allocation10 + $0x24] sm:$0xf]
    %v1755 = vld [vmem:[#allocation10 + $0x28] sm:$0xf]
    %v1756 = vld [vmem:[#allocation10 + $0x2c] sm:$0xf]
    %v1757 = vld [vmem:[#allocation10 + $0x30] sm:$0xf]
    %v1758 = vld [vmem:[#allocation10 + $0x34] sm:$0xf]
    %v1759 = vld [vmem:[#allocation10 + $0x38] sm:$0xf]
    %v1760 = vld [vmem:[#allocation10 + $0x3c] sm:$0xf]
    %v1761 = vld [vmem:[%s8] sm:$0x1]
    %v1763 = vlaneseq
    %v1764 = vshrl.u32 %v1763, 7
    %v1765 = vsub.s32 0, %v1764
    %v1766 = vrot.slane %v1761, %v1765
    %v1784 = vunpack.c.l.b16 %v1745
    %v1785 = vunpack.c.l.b16 %v1746
    %v1786 = vunpack.c.l.b16 %v1747
    %v1787 = vunpack.c.l.b16 %v1748
    %v1788 = vunpack.c.l.b16 %v1749
    %v1789 = vunpack.c.l.b16 %v1750
    %v1790 = vunpack.c.l.b16 %v1751
    %v1791 = vunpack.c.l.b16 %v1752
    %v1792 = vunpack.c.l.b16 %v1753
    %v1793 = vunpack.c.l.b16 %v1754
    %v1794 = vunpack.c.l.b16 %v1755
    %v1795 = vunpack.c.l.b16 %v1756
    %v1796 = vunpack.c.l.b16 %v1757
    %v1797 = vunpack.c.l.b16 %v1758
    %v1798 = vunpack.c.l.b16 %v1759
    %v1799 = vunpack.c.l.b16 %v1760
    %v1800 = vpack.c.b16 %v1785, %v1784
    %v1801 = vpack.c.b16 %v1787, %v1786
    %v1802 = vpack.c.b16 %v1789, %v1788
    %v1803 = vpack.c.b16 %v1791, %v1790
    %v1804 = vpack.c.b16 %v1793, %v1792
    %v1805 = vpack.c.b16 %v1795, %v1794
    %v1806 = vpack.c.b16 %v1797, %v1796
    %v1807 = vpack.c.b16 %v1799, %v1798
    %1816 = vmatprep.subr.bf16.mxu0 0
    %1817 = vmatpush1.bf16.msra.mxu0 %v1807
    %1818 = vmatprep.subr.bf16.mxu0 0
    %1819 = vmatpush1.bf16.msra.mxu0 %v1806
    %1820 = vmatprep.subr.bf16.mxu0 0
    %1821 = vmatpush1.bf16.msra.mxu0 %v1805
    %1822 = vmatprep.subr.bf16.mxu0 0
    %1823 = vmatpush1.bf16.msra.mxu0 %v1804
    %1824 = vmatprep.subr.bf16.mxu0 0
    %1825 = vmatpush1.bf16.msra.mxu0 %v1803
    %1826 = vmatprep.subr.bf16.mxu0 0
    %1827 = vmatpush1.bf16.msra.mxu0 %v1802
    %1828 = vmatprep.subr.bf16.mxu0 0
    %1829 = vmatpush1.bf16.msra.mxu0 %v1801
    %1830 = vmatprep.subr.bf16.mxu0 0
    %1831 = vmatpush1.bf16.msra.mxu0 %v1800
    %1832 = vmatprep.subr.bf16.mxu0 0
    %1833 = vmatpush2.bf16.msra.mxu0 0
    %1834 = vmatprep.subr.bf16.mxu0 0
    %1835 = vmatpush2.bf16.msra.mxu0 0
    %1836 = vmatprep.subr.bf16.mxu0 0
    %1837 = vmatpush2.bf16.msra.mxu0 0
    %1838 = vmatprep.subr.bf16.mxu0 0
    %1839 = vmatpush2.bf16.msra.mxu0 0
    %1840 = vmatprep.subr.bf16.mxu0 0
    %1841 = vmatpush2.bf16.msra.mxu0 0
    %1842 = vmatprep.subr.bf16.mxu0 0
    %1843 = vmatpush2.bf16.msra.mxu0 0
    %1844 = vmatprep.subr.bf16.mxu0 0
    %1845 = vmatpush2.bf16.msra.mxu0 0
    %1846 = vmatprep.subr.bf16.mxu0 0
    %1847 = vmatpush2.bf16.msra.mxu0 0
    %1848 = vmatprep.mubr.bf16.mxu0 0
    %1849 = vmatmul.mubr.bf16.gmra.mxu0 %v1744
    %v1850 = vpop.f32.mrf.mxu0
    %v1851 = vadd.f32 %v1766, %v1850
    %v1852 = vpop.f32.mrf.mxu0
    %v1853 = vpop.f32.mrf.mxu0
    %v1854 = vadd.f32 %v1766, %v1853
    %v1855 = vpop.f32.mrf.mxu0
    %1856 = vdwg.mxu0
    %1857 = vst [vmem:[#allocation11] sm:$0xff] %v1851
    %1858 = vst [vmem:[#allocation11 + $0x8] sm:$0xff] %v1854
    // Predicated region
    $region58: #{tpu_custom_call.1} parent=1 // pred_check
      _
    $region59: #{tpu_custom_call.1} parent=1 // pred_check_branch
      %1860 = sbr.rel (0) target = $region61
    $region60: #{tpu_custom_call.1} parent=1 // pred_region
      %s1862 = ssub.s32 256, 32
      %1863 = vsyncadd [#allocation4], %s1862
      %s1864 = sshll.u32 [#allocation11], 4
      %s1865 = int_to_ptr.vmem [resolvable:$true] %s1864
      %1870 = dma.vmem_to_hbm [thread:$0]  %s1865, 32, %s9, [#allocation4], 32, 32, 2
    $region61: #{tpu_custom_call.1} parent=1 // pred_fallthru
      _
    // Predicated region
    $region62: #{tpu_custom_call.1} parent=1 // pred_check
      _
    $region63: #{tpu_custom_call.1} parent=1 // pred_check_branch
      %1872 = sbr.rel (0) target = $region65
    $region64: #{tpu_custom_call.1} parent=1 // pred_region
      %1873 = dma.done [#allocation4], 256
    $region65: #{tpu_custom_call.1} parent=1 // pred_fallthru
      _
    %1874 = vsyncpa [#allocation3], 1
    %1875 = vsyncpa [#allocation6], 1
    %1876 = vsyncpa [#allocation9], 1
    %1877 = vsyncpa [#allocation4], 1

</llo_original>
